<compile_context>
chip_gen: v7x
topology: tpu7x:2x2x1
jax: 0.10.0
libtpu: 0.0.40
codegen_flags: <defaults>
</compile_context>

<pallas_src>
import numpy as np
import jax
import jax.numpy as jnp
from jax import lax
from jax.experimental import pallas as pl
from jax.experimental.pallas import tpu as pltpu

WIN_SIZE = 11
SIGMA = 1.5


def _fspecial_gauss_2d(size, sigma):
    # mimics the MATLAB 'fspecial' gaussian exactly as the PyTorch code does
    x, y = np.mgrid[-size // 2 + 1: size // 2 + 1, -size // 2 + 1: size // 2 + 1]
    g = np.exp(-((x ** 2 + y ** 2) / (2.0 * sigma ** 2)))
    return g / g.sum()


def _gauss_1d(size, sigma):
    # 1-D factor of the separable fspecial gaussian: W2D[i,j] == w1d[i] * w1d[j]
    k = np.arange(-size // 2 + 1, size // 2 + 1, dtype=np.float64)
    g = np.exp(-(k ** 2) / (2.0 * sigma ** 2))
    return g / g.sum()


_WINDOW_2D = _fspecial_gauss_2d(WIN_SIZE, SIGMA)   # used by the pure-JAX reference
_WINDOW_1D = _gauss_1d(WIN_SIZE, SIGMA)            # separable taps baked into Bh/Bv


def _band_matrices(H, W):
    """Constant band matrices so the separable blur runs as two MXU matmuls.

    hacc = x[., W] @ Bh[W, OW]   (horizontal taps)
    vacc = Bv[OH, H] @ hacc[H, .] (vertical taps)
    """
    OH, OW = H - WIN_SIZE + 1, W - WIN_SIZE + 1
    w1 = _WINDOW_1D.astype(np.float32)
    Bh = np.zeros((W, OW), np.float32)
    for x in range(OW):
        Bh[x:x + WIN_SIZE, x] = w1
    Bv = np.zeros((OH, H), np.float32)
    for o in range(OH):
        Bv[o, o:o + WIN_SIZE] = w1
    return Bh, Bv


def _make_fusion_loss_kernel(N, H, W):
    OH, OW = H - WIN_SIZE + 1, W - WIN_SIZE + 1
    Cc = 0.0001                     # "C" constant in Y_Upper
    C2 = (0.03 * 1.0) ** 2          # SSIM constant (K2*L)^2
    inv_img = 1.0 / float(N * H * W)
    inv_val = 1.0 / float(N * OH * OW)

    def kernel(scal_ref, ir_ref, vis_ref, fus_ref, bh_ref, bv_ref, out_ref):
        upper_w = scal_ref[0]       # SMEM scalars
        mean_w = scal_ref[1]
        res_mean = scal_ref[2]      # mean over (N,H,W) of sum(res_weight, dim=1)

        ir = ir_ref[...]            # [N, H, W]
        vis = vis_ref[...]          # [N, H, W]
        fus = fus_ref[...]          # [N, H, W]
        bh = bh_ref[...]            # [W, OW]  horizontal band matrix
        bv = bv_ref[...]            # [OH, H]  vertical band matrix

        # ------------------ Y_Upper (one-pass stats per image) ------------------
        s1 = jnp.sum(ir)
        q1 = jnp.sum(ir * ir)
        s2 = jnp.sum(vis)
        q2 = jnp.sum(vis * vis)
        m1 = s1 * inv_img
        m2 = s2 * inv_img
        # ||x - mean||_F = sqrt(sum(x^2) - cnt*mean^2)
        c1 = jnp.sqrt(jnp.maximum(q1 - s1 * m1, 0.0))
        c2 = jnp.sqrt(jnp.maximum(q2 - s2 * m2, 0.0))
        c_up = jnp.maximum(c1, c2) * upper_w
        # scalar reciprocals computed once, then multiplied (no per-element divide)
        sd = (ir - m1) * (1.0 / (c1 + Cc)) + (vis - m2) * (1.0 / (c2 + Cc))
        norm_sd = jnp.sqrt(jnp.sum(sd * sd))
        target = (c_up * (1.0 / (norm_sd + Cc))) * sd          # [N, H, W]

        # ------------------ SSIM: 11x11 gaussian via banded MXU matmuls ---------
        t2 = target.reshape(N * H, W)
        f2 = fus.reshape(N * H, W)

        def hconv(x2d):
            # horizontal pass: one MXU matmul against the band matrix
            return jnp.dot(x2d, bh,
                           preferred_element_type=jnp.float32).reshape(N, H, OW)

        h_mu1 = hconv(t2)
        h_mu2 = hconv(f2)
        h_e11 = hconv(t2 * t2)
        h_e22 = hconv(f2 * f2)
        h_e12 = hconv(t2 * f2)

        val_sum = jnp.float32(0.0)
        for n in range(N):          # static, small trip count
            # vertical pass: clean 2-D matmuls per image, no transposes/relayouts
            mu1 = jnp.dot(bv, h_mu1[n], preferred_element_type=jnp.float32)
            mu2 = jnp.dot(bv, h_mu2[n], preferred_element_type=jnp.float32)
            e11 = jnp.dot(bv, h_e11[n], preferred_element_type=jnp.float32)
            e22 = jnp.dot(bv, h_e22[n], preferred_element_type=jnp.float32)
            e12 = jnp.dot(bv, h_e12[n], preferred_element_type=jnp.float32)

            sigma1_sq = e11 - mu1 * mu1
            sigma2_sq = e22 - mu2 * mu2
            sigma12 = e12 - mu1 * mu2

            den = sigma1_sq + sigma2_sq + C2
            r = pl.reciprocal(den, approx=True)     # EUP slot
            r = r * (2.0 - den * r)                 # one Newton step -> f32-accurate
            val_sum = val_sum + jnp.sum((2.0 * sigma12 + C2) * r)

        ssim_loss = 1.0 - val_sum * inv_val

        # ------------------ pre_loss ------------------
        # mean(mean_w - sum(res, dim=1)) == mean_w - sum(res)/(N*H*W)
        pre_loss = jnp.abs(mean_w - res_mean)

        total = ssim_loss + pre_loss

        out_ref[0] = total
        out_ref[1] = ssim_loss
        out_ref[2] = pre_loss

    return kernel


def fusion_loss(ir_image, visimage_bri, res_weight, fus_img, upper_weight, mean_weight):
    """Pallas implementation of FusionLoss.forward.

    ir_image, visimage_bri, fus_img: [N, 1, H, W] float32 (NCHW, single channel)
    res_weight:                      [N, Cw, H, W] float32
    upper_weight, mean_weight:       python scalars
    Returns (total_loss, [ssim_loss, pre_loss, pre_loss]).
    """
    N, _, H, W = ir_image.shape
    assert H >= WIN_SIZE and W >= WIN_SIZE, "valid 11x11 conv requires H, W >= 11"
    OH, OW = H - WIN_SIZE + 1, W - WIN_SIZE + 1

    ir = jnp.asarray(ir_image, jnp.float32).reshape(N, H, W)
    vis = jnp.asarray(visimage_bri, jnp.float32).reshape(N, H, W)
    fus = jnp.asarray(fus_img, jnp.float32).reshape(N, H, W)

    # res_weight only contributes one scalar: reduce it with plain XLA (already at
    # HBM roofline) and never bring the [N,Cw,H,W] tensor into VMEM.
    res_mean = jnp.sum(jnp.asarray(res_weight, jnp.float32)) * (1.0 / float(N * H * W))

    scalars = jnp.stack([jnp.float32(upper_weight),
                         jnp.float32(mean_weight),
                         res_mean.astype(jnp.float32)])

    bh_np, bv_np = _band_matrices(H, W)
    bh = jnp.asarray(bh_np)
    bv = jnp.asarray(bv_np)

    # VMEM budget (f32): inputs + Y_Upper temporaries + horizontal partials + band
    # matrices + per-image vertical temporaries.  Assert (do not silently clamp)
    # that the single-shot design fits under a v7x-safe cap.
    est_bytes = 4 * (2 * 3 * N * H * W           # ir / vis / fus (+buffer margin)
                     + 4 * N * H * W             # sd / target / product temporaries
                     + 6 * N * H * OW            # 5 horizontal partials + slack
                     + W * OW + OH * H           # band matrices
                     + 16 * OH * OW)             # vertical temporaries per image
    V7X_SAFE_CAP = 56 << 20                      # headroom below v7x's 64 MiB VMEM
    assert est_bytes <= V7X_SAFE_CAP, (
        f"single-shot FusionLoss kernel needs ~{est_bytes >> 20} MiB VMEM; "
        "a row-tiled grid (10-row halo) is required at this image size")
    vmem_limit = int(min(max(est_bytes, 16 << 20), 100 << 20))

    # Advisory cost estimate for the XLA scheduler.
    flops = int(2 * 5 * N * H * W * OW           # horizontal band matmuls
                + 2 * 5 * N * OH * H * OW        # vertical band matmuls
                + 25 * N * H * W                 # Y_Upper / signal pointwise
                + 20 * N * OH * OW)              # SSIM pointwise
    bytes_accessed = int(4 * (3 * N * H * W + W * OW + OH * H + 3 + 3))
    cost = pl.CostEstimate(flops=flops,
                           transcendentals=int(N * OH * OW + 8),
                           bytes_accessed=bytes_accessed)

    kernel = _make_fusion_loss_kernel(N, H, W)
    out = pl.pallas_call(
        kernel,
        out_shape=jax.ShapeDtypeStruct((3,), jnp.float32),
        in_specs=[
            pl.BlockSpec(memory_space=pltpu.MemorySpace.SMEM),   # scalars (3,)
            pl.BlockSpec(memory_space=pltpu.MemorySpace.VMEM),   # ir  [N,H,W]
            pl.BlockSpec(memory_space=pltpu.MemorySpace.VMEM),   # vis [N,H,W]
            pl.BlockSpec(memory_space=pltpu.MemorySpace.VMEM),   # fus [N,H,W]
            pl.BlockSpec(memory_space=pltpu.MemorySpace.VMEM),   # Bh  [W,OW]
            pl.BlockSpec(memory_space=pltpu.MemorySpace.VMEM),   # Bv  [OH,H]
        ],
        out_specs=pl.BlockSpec(memory_space=pltpu.MemorySpace.SMEM),
        compiler_params=pltpu.CompilerParams(vmem_limit_bytes=vmem_limit),
        cost_estimate=cost,
    )(scalars, ir, vis, fus, bh, bv)

    total = out[0]
    ssim_loss = out[1]
    pre_loss = out[2]
    return total, [ssim_loss, pre_loss, pre_loss]


# ---------------- pure-JAX reference (for correctness sanity check) ----------------
def ref_fusion_loss(ir_image, visimage_bri, res_weight, fus_img, upper_weight, mean_weight):
    C = 0.0001
    y1 = jnp.asarray(ir_image, jnp.float32)
    y2 = jnp.asarray(visimage_bri, jnp.float32)
    m1, m2 = jnp.mean(y1), jnp.mean(y2)
    d1, d2 = y1 - m1, y2 - m2
    c1 = jnp.sqrt(jnp.sum(d1 * d1))
    c2 = jnp.sqrt(jnp.sum(d2 * d2))
    c_up = jnp.maximum(c1, c2) * upper_weight
    sd = d1 / (c1 + C) + d2 / (c2 + C)
    target = c_up * sd / (jnp.sqrt(jnp.sum(sd * sd)) + C)

    win = jnp.asarray(_WINDOW_2D, jnp.float32).reshape(1, 1, WIN_SIZE, WIN_SIZE)

    def conv(x):
        return lax.conv_general_dilated(
            x, win, (1, 1), "VALID", dimension_numbers=("NCHW", "OIHW", "NCHW"))

    C2 = (0.03 * 1.0) ** 2
    fus = jnp.asarray(fus_img, jnp.float32)
    mu1, mu2 = conv(target), conv(fus)
    s1 = conv(target * target) - mu1 * mu1
    s2 = conv(fus * fus) - mu2 * mu2
    s12 = conv(target * fus) - mu1 * mu2
    value = (2.0 * s12 + C2) / (s1 + s2 + C2)
    ssim_loss = 1.0 - jnp.mean(value)

    pre_loss = jnp.abs(jnp.mean(mean_weight - jnp.sum(res_weight, axis=1)))
    return ssim_loss + pre_loss, [ssim_loss, pre_loss, pre_loss]


if __name__ == "__main__":
    key = jax.random.PRNGKey(0)
    k1, k2, k3, k4 = jax.random.split(key, 4)
    N, H, W, Cw = 2, 16, 16, 4

    ir_image = jax.random.uniform(k1, (N, 1, H, W), jnp.float32)
    visimage_bri = jax.random.uniform(k2, (N, 1, H, W), jnp.float32)
    fus_img = jax.random.uniform(k3, (N, 1, H, W), jnp.float32)
    res_weight = jax.random.uniform(k4, (N, Cw, H, W), jnp.float32)
    upper_weight = 1.3
    mean_weight = 0.5

    total, (ssim_l, pre_l, _) = fusion_loss(
        ir_image, visimage_bri, res_weight, fus_img, upper_weight, mean_weight)
    total = jax.block_until_ready(total)

    ref_total, (ref_ssim, ref_pre, _) = ref_fusion_loss(
        ir_image, visimage_bri, res_weight, fus_img, upper_weight, mean_weight)

    assert np.allclose(np.asarray(total), np.asarray(ref_total), rtol=1e-3, atol=1e-4), \
        (float(total), float(ref_total))
    assert np.allclose(np.asarray(ssim_l), np.asarray(ref_ssim), rtol=1e-3, atol=1e-4)
    assert np.allclose(np.asarray(pre_l), np.asarray(ref_pre), rtol=1e-3, atol=1e-4)

    print("KERNEL_OK")
</pallas_src>

<mosaic_0001>
module attributes {stable_mosaic.version = 11 : i64} {
  func.func @kernel(%arg0: memref<3xf32, #tpu.memory_space<smem>>, %arg1: memref<2x16x16xf32, #tpu.memory_space<vmem>>, %arg2: memref<2x16x16xf32, #tpu.memory_space<vmem>>, %arg3: memref<2x16x16xf32, #tpu.memory_space<vmem>>, %arg4: memref<16x6xf32, #tpu.memory_space<vmem>>, %arg5: memref<6x16xf32, #tpu.memory_space<vmem>>, %arg6: memref<3xf32, #tpu.memory_space<smem>>) attributes {dimension_semantics = [], scalar_prefetch = 0 : i64, scratch_operands = 0 : i64, tpu.core_type = #tpu.core_type<tc>} {
    %c0 = arith.constant 0 : index
    %0 = memref.load %arg0[%c0] : memref<3xf32, #tpu.memory_space<smem>>
    %c1 = arith.constant 1 : index
    %1 = memref.load %arg0[%c1] : memref<3xf32, #tpu.memory_space<smem>>
    %c2 = arith.constant 2 : index
    %2 = memref.load %arg0[%c2] : memref<3xf32, #tpu.memory_space<smem>>
    %c0_0 = arith.constant 0 : index
    %c0_1 = arith.constant 0 : index
    %c0_2 = arith.constant 0 : index
    %3 = vector.load %arg1[%c0_0, %c0_1, %c0_2] : memref<2x16x16xf32, #tpu.memory_space<vmem>>, vector<2x16x16xf32>
    %c0_3 = arith.constant 0 : index
    %c0_4 = arith.constant 0 : index
    %c0_5 = arith.constant 0 : index
    %4 = vector.load %arg2[%c0_3, %c0_4, %c0_5] : memref<2x16x16xf32, #tpu.memory_space<vmem>>, vector<2x16x16xf32>
    %c0_6 = arith.constant 0 : index
    %c0_7 = arith.constant 0 : index
    %c0_8 = arith.constant 0 : index
    %5 = vector.load %arg3[%c0_6, %c0_7, %c0_8] : memref<2x16x16xf32, #tpu.memory_space<vmem>>, vector<2x16x16xf32>
    %c0_9 = arith.constant 0 : index
    %c0_10 = arith.constant 0 : index
    %6 = vector.load %arg4[%c0_9, %c0_10] : memref<16x6xf32, #tpu.memory_space<vmem>>, vector<16x6xf32>
    %c0_11 = arith.constant 0 : index
    %c0_12 = arith.constant 0 : index
    %7 = vector.load %arg5[%c0_11, %c0_12] : memref<6x16xf32, #tpu.memory_space<vmem>>, vector<6x16xf32>
    %8 = vector.shape_cast %3 : vector<2x16x16xf32> to vector<1x2x16x16xf32>
    %cst = arith.constant dense<0.000000e+00> : vector<1xf32>
    %9 = vector.multi_reduction <add>, %8, %cst [1, 2, 3] : vector<1x2x16x16xf32> to vector<1xf32>
    %10 = vector.shape_cast %9 : vector<1xf32> to vector<1x1x1x1xf32>
    %11 = vector.extract %10[0, 0, 0, 0] : f32 from vector<1x1x1x1xf32>
    %12 = arith.mulf %3, %3 : vector<2x16x16xf32>
    %13 = vector.shape_cast %12 : vector<2x16x16xf32> to vector<1x2x16x16xf32>
    %cst_13 = arith.constant dense<0.000000e+00> : vector<1xf32>
    %14 = vector.multi_reduction <add>, %13, %cst_13 [1, 2, 3] : vector<1x2x16x16xf32> to vector<1xf32>
    %15 = vector.shape_cast %14 : vector<1xf32> to vector<1x1x1x1xf32>
    %16 = vector.extract %15[0, 0, 0, 0] : f32 from vector<1x1x1x1xf32>
    %17 = vector.shape_cast %4 : vector<2x16x16xf32> to vector<1x2x16x16xf32>
    %cst_14 = arith.constant dense<0.000000e+00> : vector<1xf32>
    %18 = vector.multi_reduction <add>, %17, %cst_14 [1, 2, 3] : vector<1x2x16x16xf32> to vector<1xf32>
    %19 = vector.shape_cast %18 : vector<1xf32> to vector<1x1x1x1xf32>
    %20 = vector.extract %19[0, 0, 0, 0] : f32 from vector<1x1x1x1xf32>
    %21 = arith.mulf %4, %4 : vector<2x16x16xf32>
    %22 = vector.shape_cast %21 : vector<2x16x16xf32> to vector<1x2x16x16xf32>
    %cst_15 = arith.constant dense<0.000000e+00> : vector<1xf32>
    %23 = vector.multi_reduction <add>, %22, %cst_15 [1, 2, 3] : vector<1x2x16x16xf32> to vector<1xf32>
    %24 = vector.shape_cast %23 : vector<1xf32> to vector<1x1x1x1xf32>
    %25 = vector.extract %24[0, 0, 0, 0] : f32 from vector<1x1x1x1xf32>
    %cst_16 = arith.constant 0.001953125 : f32
    %26 = arith.mulf %11, %cst_16 : f32
    %cst_17 = arith.constant 0.001953125 : f32
    %27 = arith.mulf %20, %cst_17 : f32
    %28 = arith.mulf %11, %26 : f32
    %29 = arith.subf %16, %28 : f32
    %cst_18 = arith.constant 0.000000e+00 : f32
    %30 = arith.maximumf %29, %cst_18 : f32
    %31 = math.sqrt %30 : f32
    %32 = arith.mulf %20, %27 : f32
    %33 = arith.subf %25, %32 : f32
    %cst_19 = arith.constant 0.000000e+00 : f32
    %34 = arith.maximumf %33, %cst_19 : f32
    %35 = math.sqrt %34 : f32
    %36 = arith.maximumf %31, %35 : f32
    %37 = arith.mulf %36, %0 : f32
    %38 = vector.broadcast %26 : f32 to vector<2x16x16xf32>
    %39 = arith.subf %3, %38 : vector<2x16x16xf32>
    %cst_20 = arith.constant 9.99999974E-5 : f32
    %40 = arith.addf %31, %cst_20 : f32
    %cst_21 = arith.constant 1.000000e+00 : f32
    %41 = arith.divf %cst_21, %40 : f32
    %42 = vector.broadcast %41 : f32 to vector<2x16x16xf32>
    %43 = arith.mulf %39, %42 : vector<2x16x16xf32>
    %44 = vector.broadcast %27 : f32 to vector<2x16x16xf32>
    %45 = arith.subf %4, %44 : vector<2x16x16xf32>
    %cst_22 = arith.constant 9.99999974E-5 : f32
    %46 = arith.addf %35, %cst_22 : f32
    %cst_23 = arith.constant 1.000000e+00 : f32
    %47 = arith.divf %cst_23, %46 : f32
    %48 = vector.broadcast %47 : f32 to vector<2x16x16xf32>
    %49 = arith.mulf %45, %48 : vector<2x16x16xf32>
    %50 = arith.addf %43, %49 : vector<2x16x16xf32>
    %51 = arith.mulf %50, %50 : vector<2x16x16xf32>
    %52 = vector.shape_cast %51 : vector<2x16x16xf32> to vector<1x2x16x16xf32>
    %cst_24 = arith.constant dense<0.000000e+00> : vector<1xf32>
    %53 = vector.multi_reduction <add>, %52, %cst_24 [1, 2, 3] : vector<1x2x16x16xf32> to vector<1xf32>
    %54 = vector.shape_cast %53 : vector<1xf32> to vector<1x1x1x1xf32>
    %55 = vector.extract %54[0, 0, 0, 0] : f32 from vector<1x1x1x1xf32>
    %56 = math.sqrt %55 : f32
    %cst_25 = arith.constant 9.99999974E-5 : f32
    %57 = arith.addf %56, %cst_25 : f32
    %cst_26 = arith.constant 1.000000e+00 : f32
    %58 = arith.divf %cst_26, %57 : f32
    %59 = arith.mulf %37, %58 : f32
    %60 = vector.broadcast %59 : f32 to vector<2x16x16xf32>
    %61 = arith.mulf %60, %50 : vector<2x16x16xf32>
    %62 = vector.shape_cast %61 : vector<2x16x16xf32> to vector<32x16xf32>
    %63 = vector.shape_cast %5 : vector<2x16x16xf32> to vector<32x16xf32>
    %cst_27 = arith.constant dense<0.000000e+00> : vector<32x6xf32>
    %64 = tpu.matmul %62, %6, %cst_27 {dimension_numbers = #tpu.dot_dimension_numbers<[1], [0], [0], [1], [0, 0, 1, 1], [], []>} : vector<32x16xf32>, vector<16x6xf32>, vector<32x6xf32> -> vector<32x6xf32>
    %65 = vector.shape_cast %64 : vector<32x6xf32> to vector<2x16x6xf32>
    %cst_28 = arith.constant dense<0.000000e+00> : vector<32x6xf32>
    %66 = tpu.matmul %63, %6, %cst_28 {dimension_numbers = #tpu.dot_dimension_numbers<[1], [0], [0], [1], [0, 0, 1, 1], [], []>} : vector<32x16xf32>, vector<16x6xf32>, vector<32x6xf32> -> vector<32x6xf32>
    %67 = vector.shape_cast %66 : vector<32x6xf32> to vector<2x16x6xf32>
    %68 = arith.mulf %62, %62 : vector<32x16xf32>
    %cst_29 = arith.constant dense<0.000000e+00> : vector<32x6xf32>
    %69 = tpu.matmul %68, %6, %cst_29 {dimension_numbers = #tpu.dot_dimension_numbers<[1], [0], [0], [1], [0, 0, 1, 1], [], []>} : vector<32x16xf32>, vector<16x6xf32>, vector<32x6xf32> -> vector<32x6xf32>
    %70 = vector.shape_cast %69 : vector<32x6xf32> to vector<2x16x6xf32>
    %71 = arith.mulf %63, %63 : vector<32x16xf32>
    %cst_30 = arith.constant dense<0.000000e+00> : vector<32x6xf32>
    %72 = tpu.matmul %71, %6, %cst_30 {dimension_numbers = #tpu.dot_dimension_numbers<[1], [0], [0], [1], [0, 0, 1, 1], [], []>} : vector<32x16xf32>, vector<16x6xf32>, vector<32x6xf32> -> vector<32x6xf32>
    %73 = vector.shape_cast %72 : vector<32x6xf32> to vector<2x16x6xf32>
    %74 = arith.mulf %62, %63 : vector<32x16xf32>
    %cst_31 = arith.constant dense<0.000000e+00> : vector<32x6xf32>
    %75 = tpu.matmul %74, %6, %cst_31 {dimension_numbers = #tpu.dot_dimension_numbers<[1], [0], [0], [1], [0, 0, 1, 1], [], []>} : vector<32x16xf32>, vector<16x6xf32>, vector<32x6xf32> -> vector<32x6xf32>
    %76 = vector.shape_cast %75 : vector<32x6xf32> to vector<2x16x6xf32>
    %77 = vector.extract_strided_slice %65 {offsets = [0, 0, 0], sizes = [1, 16, 6], strides = [1, 1, 1]} : vector<2x16x6xf32> to vector<1x16x6xf32>
    %78 = vector.shape_cast %77 : vector<1x16x6xf32> to vector<16x6xf32>
    %cst_32 = arith.constant dense<0.000000e+00> : vector<6x6xf32>
    %79 = tpu.matmul %7, %78, %cst_32 {dimension_numbers = #tpu.dot_dimension_numbers<[1], [0], [0], [1], [0, 0, 1, 1], [], []>} : vector<6x16xf32>, vector<16x6xf32>, vector<6x6xf32> -> vector<6x6xf32>
    %80 = vector.extract_strided_slice %67 {offsets = [0, 0, 0], sizes = [1, 16, 6], strides = [1, 1, 1]} : vector<2x16x6xf32> to vector<1x16x6xf32>
    %81 = vector.shape_cast %80 : vector<1x16x6xf32> to vector<16x6xf32>
    %cst_33 = arith.constant dense<0.000000e+00> : vector<6x6xf32>
    %82 = tpu.matmul %7, %81, %cst_33 {dimension_numbers = #tpu.dot_dimension_numbers<[1], [0], [0], [1], [0, 0, 1, 1], [], []>} : vector<6x16xf32>, vector<16x6xf32>, vector<6x6xf32> -> vector<6x6xf32>
    %83 = vector.extract_strided_slice %70 {offsets = [0, 0, 0], sizes = [1, 16, 6], strides = [1, 1, 1]} : vector<2x16x6xf32> to vector<1x16x6xf32>
    %84 = vector.shape_cast %83 : vector<1x16x6xf32> to vector<16x6xf32>
    %cst_34 = arith.constant dense<0.000000e+00> : vector<6x6xf32>
    %85 = tpu.matmul %7, %84, %cst_34 {dimension_numbers = #tpu.dot_dimension_numbers<[1], [0], [0], [1], [0, 0, 1, 1], [], []>} : vector<6x16xf32>, vector<16x6xf32>, vector<6x6xf32> -> vector<6x6xf32>
    %86 = vector.extract_strided_slice %73 {offsets = [0, 0, 0], sizes = [1, 16, 6], strides = [1, 1, 1]} : vector<2x16x6xf32> to vector<1x16x6xf32>
    %87 = vector.shape_cast %86 : vector<1x16x6xf32> to vector<16x6xf32>
    %cst_35 = arith.constant dense<0.000000e+00> : vector<6x6xf32>
    %88 = tpu.matmul %7, %87, %cst_35 {dimension_numbers = #tpu.dot_dimension_numbers<[1], [0], [0], [1], [0, 0, 1, 1], [], []>} : vector<6x16xf32>, vector<16x6xf32>, vector<6x6xf32> -> vector<6x6xf32>
    %89 = vector.extract_strided_slice %76 {offsets = [0, 0, 0], sizes = [1, 16, 6], strides = [1, 1, 1]} : vector<2x16x6xf32> to vector<1x16x6xf32>
    %90 = vector.shape_cast %89 : vector<1x16x6xf32> to vector<16x6xf32>
    %cst_36 = arith.constant dense<0.000000e+00> : vector<6x6xf32>
    %91 = tpu.matmul %7, %90, %cst_36 {dimension_numbers = #tpu.dot_dimension_numbers<[1], [0], [0], [1], [0, 0, 1, 1], [], []>} : vector<6x16xf32>, vector<16x6xf32>, vector<6x6xf32> -> vector<6x6xf32>
    %92 = arith.mulf %79, %79 : vector<6x6xf32>
    %93 = arith.subf %85, %92 : vector<6x6xf32>
    %94 = arith.mulf %82, %82 : vector<6x6xf32>
    %95 = arith.subf %88, %94 : vector<6x6xf32>
    %96 = arith.mulf %79, %82 : vector<6x6xf32>
    %97 = arith.subf %91, %96 : vector<6x6xf32>
    %98 = arith.addf %93, %95 : vector<6x6xf32>
    %cst_37 = arith.constant 8.99999984E-4 : f32
    %99 = vector.broadcast %cst_37 : f32 to vector<6x6xf32>
    %100 = arith.addf %98, %99 : vector<6x6xf32>
    %101 = tpu.reciprocal %100 {approx = true} : vector<6x6xf32> -> vector<6x6xf32>
    %102 = arith.mulf %100, %101 : vector<6x6xf32>
    %cst_38 = arith.constant 2.000000e+00 : f32
    %103 = vector.broadcast %cst_38 : f32 to vector<6x6xf32>
    %104 = arith.subf %103, %102 : vector<6x6xf32>
    %105 = arith.mulf %101, %104 : vector<6x6xf32>
    %cst_39 = arith.constant 2.000000e+00 : f32
    %106 = vector.broadcast %cst_39 : f32 to vector<6x6xf32>
    %107 = arith.mulf %106, %97 : vector<6x6xf32>
    %cst_40 = arith.constant 8.99999984E-4 : f32
    %108 = vector.broadcast %cst_40 : f32 to vector<6x6xf32>
    %109 = arith.addf %107, %108 : vector<6x6xf32>
    %110 = arith.mulf %109, %105 : vector<6x6xf32>
    %111 = vector.shape_cast %110 : vector<6x6xf32> to vector<1x6x6xf32>
    %cst_41 = arith.constant dense<0.000000e+00> : vector<1xf32>
    %112 = vector.multi_reduction <add>, %111, %cst_41 [1, 2] : vector<1x6x6xf32> to vector<1xf32>
    %113 = vector.shape_cast %112 : vector<1xf32> to vector<1x1x1xf32>
    %114 = vector.extract %113[0, 0, 0] : f32 from vector<1x1x1xf32>
    %cst_42 = arith.constant 0.000000e+00 : f32
    %115 = arith.addf %cst_42, %114 : f32
    %116 = vector.extract_strided_slice %65 {offsets = [1, 0, 0], sizes = [1, 16, 6], strides = [1, 1, 1]} : vector<2x16x6xf32> to vector<1x16x6xf32>
    %117 = vector.shape_cast %116 : vector<1x16x6xf32> to vector<16x6xf32>
    %cst_43 = arith.constant dense<0.000000e+00> : vector<6x6xf32>
    %118 = tpu.matmul %7, %117, %cst_43 {dimension_numbers = #tpu.dot_dimension_numbers<[1], [0], [0], [1], [0, 0, 1, 1], [], []>} : vector<6x16xf32>, vector<16x6xf32>, vector<6x6xf32> -> vector<6x6xf32>
    %119 = vector.extract_strided_slice %67 {offsets = [1, 0, 0], sizes = [1, 16, 6], strides = [1, 1, 1]} : vector<2x16x6xf32> to vector<1x16x6xf32>
    %120 = vector.shape_cast %119 : vector<1x16x6xf32> to vector<16x6xf32>
    %cst_44 = arith.constant dense<0.000000e+00> : vector<6x6xf32>
    %121 = tpu.matmul %7, %120, %cst_44 {dimension_numbers = #tpu.dot_dimension_numbers<[1], [0], [0], [1], [0, 0, 1, 1], [], []>} : vector<6x16xf32>, vector<16x6xf32>, vector<6x6xf32> -> vector<6x6xf32>
    %122 = vector.extract_strided_slice %70 {offsets = [1, 0, 0], sizes = [1, 16, 6], strides = [1, 1, 1]} : vector<2x16x6xf32> to vector<1x16x6xf32>
    %123 = vector.shape_cast %122 : vector<1x16x6xf32> to vector<16x6xf32>
    %cst_45 = arith.constant dense<0.000000e+00> : vector<6x6xf32>
    %124 = tpu.matmul %7, %123, %cst_45 {dimension_numbers = #tpu.dot_dimension_numbers<[1], [0], [0], [1], [0, 0, 1, 1], [], []>} : vector<6x16xf32>, vector<16x6xf32>, vector<6x6xf32> -> vector<6x6xf32>
    %125 = vector.extract_strided_slice %73 {offsets = [1, 0, 0], sizes = [1, 16, 6], strides = [1, 1, 1]} : vector<2x16x6xf32> to vector<1x16x6xf32>
    %126 = vector.shape_cast %125 : vector<1x16x6xf32> to vector<16x6xf32>
    %cst_46 = arith.constant dense<0.000000e+00> : vector<6x6xf32>
    %127 = tpu.matmul %7, %126, %cst_46 {dimension_numbers = #tpu.dot_dimension_numbers<[1], [0], [0], [1], [0, 0, 1, 1], [], []>} : vector<6x16xf32>, vector<16x6xf32>, vector<6x6xf32> -> vector<6x6xf32>
    %128 = vector.extract_strided_slice %76 {offsets = [1, 0, 0], sizes = [1, 16, 6], strides = [1, 1, 1]} : vector<2x16x6xf32> to vector<1x16x6xf32>
    %129 = vector.shape_cast %128 : vector<1x16x6xf32> to vector<16x6xf32>
    %cst_47 = arith.constant dense<0.000000e+00> : vector<6x6xf32>
    %130 = tpu.matmul %7, %129, %cst_47 {dimension_numbers = #tpu.dot_dimension_numbers<[1], [0], [0], [1], [0, 0, 1, 1], [], []>} : vector<6x16xf32>, vector<16x6xf32>, vector<6x6xf32> -> vector<6x6xf32>
    %131 = arith.mulf %118, %118 : vector<6x6xf32>
    %132 = arith.subf %124, %131 : vector<6x6xf32>
    %133 = arith.mulf %121, %121 : vector<6x6xf32>
    %134 = arith.subf %127, %133 : vector<6x6xf32>
    %135 = arith.mulf %118, %121 : vector<6x6xf32>
    %136 = arith.subf %130, %135 : vector<6x6xf32>
    %137 = arith.addf %132, %134 : vector<6x6xf32>
    %cst_48 = arith.constant 8.99999984E-4 : f32
    %138 = vector.broadcast %cst_48 : f32 to vector<6x6xf32>
    %139 = arith.addf %137, %138 : vector<6x6xf32>
    %140 = tpu.reciprocal %139 {approx = true} : vector<6x6xf32> -> vector<6x6xf32>
    %141 = arith.mulf %139, %140 : vector<6x6xf32>
    %cst_49 = arith.constant 2.000000e+00 : f32
    %142 = vector.broadcast %cst_49 : f32 to vector<6x6xf32>
    %143 = arith.subf %142, %141 : vector<6x6xf32>
    %144 = arith.mulf %140, %143 : vector<6x6xf32>
    %cst_50 = arith.constant 2.000000e+00 : f32
    %145 = vector.broadcast %cst_50 : f32 to vector<6x6xf32>
    %146 = arith.mulf %145, %136 : vector<6x6xf32>
    %cst_51 = arith.constant 8.99999984E-4 : f32
    %147 = vector.broadcast %cst_51 : f32 to vector<6x6xf32>
    %148 = arith.addf %146, %147 : vector<6x6xf32>
    %149 = arith.mulf %148, %144 : vector<6x6xf32>
    %150 = vector.shape_cast %149 : vector<6x6xf32> to vector<1x6x6xf32>
    %cst_52 = arith.constant dense<0.000000e+00> : vector<1xf32>
    %151 = vector.multi_reduction <add>, %150, %cst_52 [1, 2] : vector<1x6x6xf32> to vector<1xf32>
    %152 = vector.shape_cast %151 : vector<1xf32> to vector<1x1x1xf32>
    %153 = vector.extract %152[0, 0, 0] : f32 from vector<1x1x1xf32>
    %154 = arith.addf %115, %153 : f32
    %cst_53 = arith.constant 0.013888889 : f32
    %155 = arith.mulf %154, %cst_53 : f32
    %cst_54 = arith.constant 1.000000e+00 : f32
    %156 = arith.subf %cst_54, %155 : f32
    %157 = arith.subf %1, %2 : f32
    %158 = math.absf %157 : f32
    %159 = arith.addf %156, %158 : f32
    %c0_55 = arith.constant 0 : index
    %160 = memref.load %arg6[%c0_55] : memref<3xf32, #tpu.memory_space<smem>>
    memref.store %159, %arg6[%c0_55] : memref<3xf32, #tpu.memory_space<smem>>
    %c1_56 = arith.constant 1 : index
    %161 = memref.load %arg6[%c1_56] : memref<3xf32, #tpu.memory_space<smem>>
    memref.store %156, %arg6[%c1_56] : memref<3xf32, #tpu.memory_space<smem>>
    %c2_57 = arith.constant 2 : index
    %162 = memref.load %arg6[%c2_57] : memref<3xf32, #tpu.memory_space<smem>>
    memref.store %158, %arg6[%c2_57] : memref<3xf32, #tpu.memory_space<smem>>
    return
  }
}

</mosaic_0001>

<llo_original>
// kernel: tpu_custom_call.1
$region0: #{tpu_custom_call.1}
  #allocation0 [shape = 'u32[]', space=smem, size = 0x4, offset = 0x4, fixed_abs, tag = 'smem constant byte address 0x4 - core index']
  #allocation1 [shape = 'u32[144,128]{1,0:T(1,128)}', space=vmem, size = 0x12000, scoped, tag = 'internal scratch']
  %s0 = inlined_call_operand.vmem [shape: f32[3], index: 0, kind: input, shape index: {}]
  %s1 = inlined_call_operand.hbm [shape: f32[2,16,16], index: 1, kind: input, shape index: {}]
  %s2 = inlined_call_operand.hbm [shape: f32[2,16,16], index: 2, kind: input, shape index: {}]
  %s3 = inlined_call_operand.vmem [shape: f32[2,16,16], index: 3, kind: input, shape index: {}]
  %s4 = inlined_call_operand.vmem [shape: f32[16,6], index: 4, kind: input, shape index: {}]
  %s5 = inlined_call_operand.vmem [shape: f32[6,16], index: 5, kind: input, shape index: {}]
  %s6 = inlined_call_operand.hbm [shape: f32[3], index: 6, kind: output, shape index: {}]
  %s7 = sld [smem:[#allocation0]]
  $region46: #{tpu_custom_call.1} parent=0
    _
  %s9 = ssub.s32 1, %s7
  %s10 = scalar_select 0, %s9, %s7
  $region1: #{tpu_custom_call.1} parent=0
    #allocation2 [shape = 'u8[512]{0}', space=smem, size = 0x200, scoped, tag = 'input window, operand 0, single buffered']
    #allocation3 [shape = 's32[1]{0}', space=sflag, size = 0x4, scoped, tag = 'scoped memory for tpu_custom_call.1']
    #allocation4 [shape = 's32[1]{0}', space=sflag, size = 0x4, scoped, tag = 'scoped memory for tpu_custom_call.1']
    #allocation5 [shape = 's32[1]{0}', space=sflag, size = 0x4, scoped, tag = 'scoped memory for tpu_custom_call.1']
    #allocation6 [shape = 'u8[16384]{0}', space=vmem, size = 0x4000, scoped, tag = 'input window, operand 1, single buffered']
    #allocation7 [shape = 'u8[16384]{0}', space=vmem, size = 0x4000, scoped, tag = 'input window, operand 2, single buffered']
    #allocation8 [shape = 's32[1]{0}', space=sflag, size = 0x4, scoped, tag = 'scoped memory for tpu_custom_call.1']
    #allocation9 [shape = 'u8[512]{0}', space=smem, size = 0x200, scoped, tag = 'output window, operand 0, single buffered']
    %11 = vsyncpa [#allocation5], 0
    %12 = vsyncpa [#allocation3], 0
    %13 = vsyncpa [#allocation8], 0
    %14 = vsyncpa [#allocation4], 0
    // Predicated region
    $region2: #{tpu_custom_call.1} parent=1 // pred_check
      _
    $region3: #{tpu_custom_call.1} parent=1 // pred_check_branch
      %16 = sbr.rel (0) target = $region5
    $region4: #{tpu_custom_call.1} parent=1 // pred_region
      %s18 = ssub.s32 16, 16
      %19 = vsyncadd [#allocation5], %s18
      %s21 = sshll.u32 %s0, 4
      %s22 = int_to_ptr.vmem [resolvable:$true] %s21
      %24 = dma.vmem_to_smem %s22, 16, [#allocation2], [#allocation5]
    $region5: #{tpu_custom_call.1} parent=1 // pred_fallthru
      _
    // Predicated region
    $region6: #{tpu_custom_call.1} parent=1 // pred_check
      _
    $region7: #{tpu_custom_call.1} parent=1 // pred_check_branch
      %26 = sbr.rel (0) target = $region9
    $region8: #{tpu_custom_call.1} parent=1 // pred_region
      %s28 = ssub.s32 512, 512
      %29 = vsyncadd [#allocation3], %s28
      %s30 = sshll.u32 [#allocation6], 4
      %s31 = int_to_ptr.vmem [resolvable:$true] %s30
      %36 = dma.hbm_to_vmem [thread:$0]  %s1, 512, %s31, [#allocation3], 128, 128, 8
    $region9: #{tpu_custom_call.1} parent=1 // pred_fallthru
      _
    // Predicated region
    $region10: #{tpu_custom_call.1} parent=1 // pred_check
      _
    $region11: #{tpu_custom_call.1} parent=1 // pred_check_branch
      %38 = sbr.rel (0) target = $region13
    $region12: #{tpu_custom_call.1} parent=1 // pred_region
      %s40 = ssub.s32 512, 512
      %41 = vsyncadd [#allocation8], %s40
      %s42 = sshll.u32 [#allocation7], 4
      %s43 = int_to_ptr.vmem [resolvable:$true] %s42
      %48 = dma.hbm_to_vmem [thread:$0]  %s2, 512, %s43, [#allocation8], 128, 128, 8
    $region13: #{tpu_custom_call.1} parent=1 // pred_fallthru
      _
    // Predicated region
    $region14: #{tpu_custom_call.1} parent=1 // pred_check
      _
    $region15: #{tpu_custom_call.1} parent=1 // pred_check_branch
      %50 = sbr.rel (0) target = $region17
    $region16: #{tpu_custom_call.1} parent=1 // pred_region
      _
    $region17: #{tpu_custom_call.1} parent=1 // pred_fallthru
      _
    // Predicated region
    $region18: #{tpu_custom_call.1} parent=1 // pred_check
      _
    $region19: #{tpu_custom_call.1} parent=1 // pred_check_branch
      %52 = sbr.rel (0) target = $region21
    $region20: #{tpu_custom_call.1} parent=1 // pred_region
      _
    $region21: #{tpu_custom_call.1} parent=1 // pred_fallthru
      _
    // Predicated region
    $region22: #{tpu_custom_call.1} parent=1 // pred_check
      _
    $region23: #{tpu_custom_call.1} parent=1 // pred_check_branch
      %54 = sbr.rel (0) target = $region25
    $region24: #{tpu_custom_call.1} parent=1 // pred_region
      _
    $region25: #{tpu_custom_call.1} parent=1 // pred_fallthru
      _
    // Predicated region
    $region26: #{tpu_custom_call.1} parent=1 // pred_check
      _
    $region27: #{tpu_custom_call.1} parent=1 // pred_check_branch
      %56 = sbr.rel (0) target = $region29
    $region28: #{tpu_custom_call.1} parent=1 // pred_region
      %57 = dma.done [#allocation5], 16
    $region29: #{tpu_custom_call.1} parent=1 // pred_fallthru
      _
    // Predicated region
    $region30: #{tpu_custom_call.1} parent=1 // pred_check
      _
    $region31: #{tpu_custom_call.1} parent=1 // pred_check_branch
      %59 = sbr.rel (0) target = $region33
    $region32: #{tpu_custom_call.1} parent=1 // pred_region
      %60 = dma.done [#allocation3], 512
    $region33: #{tpu_custom_call.1} parent=1 // pred_fallthru
      _
    // Predicated region
    $region34: #{tpu_custom_call.1} parent=1 // pred_check
      _
    $region35: #{tpu_custom_call.1} parent=1 // pred_check_branch
      %62 = sbr.rel (0) target = $region37
    $region36: #{tpu_custom_call.1} parent=1 // pred_region
      %63 = dma.done [#allocation8], 512
    $region37: #{tpu_custom_call.1} parent=1 // pred_fallthru
      _
    %64 = sfence
    %s65 = sld [smem:[#allocation2]]
    %s66 = sld [smem:[#allocation2 + $0x1]]
    %s67 = sld [smem:[#allocation2 + $0x2]]
    %v68 = vld [vmem:[#allocation6] sm:$0xff]
    %v69 = vld [vmem:[#allocation6 + $0x8] sm:$0xff]
    %v70 = vld [vmem:[#allocation6 + $0x10] sm:$0xff]
    %v71 = vld [vmem:[#allocation6 + $0x18] sm:$0xff]
    %v72 = vld [vmem:[#allocation7] sm:$0xff]
    %v73 = vld [vmem:[#allocation7 + $0x8] sm:$0xff]
    %v74 = vld [vmem:[#allocation7 + $0x10] sm:$0xff]
    %v75 = vld [vmem:[#allocation7 + $0x18] sm:$0xff]
    %v76 = vld [vmem:[%s3] sm:$0xff]
    %v77 = vld [vmem:[%s3 + $0x8] sm:$0xff]
    %v78 = vld [vmem:[%s3 + $0x10] sm:$0xff]
    %v79 = vld [vmem:[%s3 + $0x18] sm:$0xff]
    %v80 = vld [vmem:[%s4] sm:$0xff]
    %v81 = vld [vmem:[%s4 + $0x8] sm:$0xff]
    %v82 = vld [vmem:[%s5] sm:$0x3f]
    %vm83 = vcmask 130048
    %v84 = vsel %vm83, %v68, 0.0
    %v85 = vsel %vm83, %v69, 0.0
    %v86 = vadd.f32 %v84, %v85
    %v87 = vsel %vm83, %v70, 0.0
    %v88 = vadd.f32 %v86, %v87
    %v89 = vsel %vm83, %v71, 0.0
    %v90 = vadd.f32 %v88, %v89
    %91 = vadd.xlane.f32.xlu0 %v90
    %v92 = vpop.xlane.xlu0 %91
    %v93 = vrot.slane %v92, 4
    %v94 = vadd.f32 %v92, %v93
    %v95 = vrot.slane %v94, 2
    %v96 = vadd.f32 %v94, %v95
    %v97 = vrot.slane %v96, 1
    %v98 = vadd.f32 %v96, %v97
    %s99 = vtos %v98
    %v100 = vmul.f32 %v68, %v68
    %v101 = vmul.f32 %v69, %v69
    %v102 = vmul.f32 %v70, %v70
    %v103 = vmul.f32 %v71, %v71
    %v104 = vsel %vm83, %v100, 0.0
    %v105 = vsel %vm83, %v101, 0.0
    %v106 = vadd.f32 %v104, %v105
    %v107 = vsel %vm83, %v102, 0.0
    %v108 = vadd.f32 %v106, %v107
    %v109 = vsel %vm83, %v103, 0.0
    %v110 = vadd.f32 %v108, %v109
    %111 = vadd.xlane.f32.xlu0 %v110
    %v112 = vpop.xlane.xlu0 %111
    %v113 = vrot.slane %v112, 4
    %v114 = vadd.f32 %v112, %v113
    %v115 = vrot.slane %v114, 2
    %v116 = vadd.f32 %v114, %v115
    %v117 = vrot.slane %v116, 1
    %v118 = vadd.f32 %v116, %v117
    %s119 = vtos %v118
    %v120 = vsel %vm83, %v72, 0.0
    %v121 = vsel %vm83, %v73, 0.0
    %v122 = vadd.f32 %v120, %v121
    %v123 = vsel %vm83, %v74, 0.0
    %v124 = vadd.f32 %v122, %v123
    %v125 = vsel %vm83, %v75, 0.0
    %v126 = vadd.f32 %v124, %v125
    %127 = vadd.xlane.f32.xlu0 %v126
    %v128 = vpop.xlane.xlu0 %127
    %v129 = vrot.slane %v128, 4
    %v130 = vadd.f32 %v128, %v129
    %v131 = vrot.slane %v130, 2
    %v132 = vadd.f32 %v130, %v131
    %v133 = vrot.slane %v132, 1
    %v134 = vadd.f32 %v132, %v133
    %s135 = vtos %v134
    %v136 = vmul.f32 %v72, %v72
    %v137 = vmul.f32 %v73, %v73
    %v138 = vmul.f32 %v74, %v74
    %v139 = vmul.f32 %v75, %v75
    %v140 = vsel %vm83, %v136, 0.0
    %v141 = vsel %vm83, %v137, 0.0
    %v142 = vadd.f32 %v140, %v141
    %v143 = vsel %vm83, %v138, 0.0
    %v144 = vadd.f32 %v142, %v143
    %v145 = vsel %vm83, %v139, 0.0
    %v146 = vadd.f32 %v144, %v145
    %147 = vadd.xlane.f32.xlu0 %v146
    %v148 = vpop.xlane.xlu0 %147
    %v149 = vrot.slane %v148, 4
    %v150 = vadd.f32 %v148, %v149
    %v151 = vrot.slane %v150, 2
    %v152 = vadd.f32 %v150, %v151
    %v153 = vrot.slane %v152, 1
    %v154 = vadd.f32 %v152, %v153
    %s155 = vtos %v154
    %s156 = smul.f32 %s99, 0.001953125
    %s157 = smul.f32 %s135, 0.001953125
    %s158 = smul.f32 %s99, %s156
    %s159 = ssub.f32 %s119, %s158
    %s160 = smax.f32 %s159, 0.0
    %v161 = vstv %s160
    %v162 = vrsqrt.pop %v161
    %v163 = vmul.f32 %v161, %v162
    %vm164 = vcmp.eq.f32.partialorder %v161, inf
    %v165 = vsel %vm164, %v161, %v163
    %vm166 = vcmp.eq.f32.partialorder %v161, 0.0
    %v167 = vand.u32 %v161, 2147483648
    %v168 = vsel %vm166, %v167, %v165
    %s169 = vtos %v168
    %s170 = smul.f32 %s135, %s157
    %s171 = ssub.f32 %s155, %s170
    %s172 = smax.f32 %s171, 0.0
    %v173 = vstv %s172
    %v174 = vrsqrt.pop %v173
    %v175 = vmul.f32 %v173, %v174
    %vm176 = vcmp.eq.f32.partialorder %v173, inf
    %v177 = vsel %vm176, %v173, %v175
    %vm178 = vcmp.eq.f32.partialorder %v173, 0.0
    %v179 = vand.u32 %v173, 2147483648
    %v180 = vsel %vm178, %v179, %v177
    %s181 = vtos %v180
    %s182 = smax.f32 %s169, %s181
    %s183 = smul.f32 %s182, %s65
    %v184 = vstv %s156
    %v185 = vsub.f32 %v68, %v184
    %v186 = vsub.f32 %v69, %v184
    %v187 = vsub.f32 %v70, %v184
    %v188 = vsub.f32 %v71, %v184
    %s189 = sadd.f32 %s169, 0.0001
    %v190 = vstv %s189
    %v191 = vrcp.pop %v190
    %s192 = vtos %v191
    %v193 = vstv %s192
    %v194 = vmul.f32 %v185, %v193
    %v195 = vmul.f32 %v186, %v193
    %v196 = vmul.f32 %v187, %v193
    %v197 = vmul.f32 %v188, %v193
    %v198 = vstv %s157
    %v199 = vsub.f32 %v72, %v198
    %v200 = vsub.f32 %v73, %v198
    %v201 = vsub.f32 %v74, %v198
    %v202 = vsub.f32 %v75, %v198
    %s203 = sadd.f32 %s181, 0.0001
    %v204 = vstv %s203
    %v205 = vrcp.pop %v204
    %s206 = vtos %v205
    %v207 = vstv %s206
    %v208 = vmul.f32 %v199, %v207
    %v209 = vmul.f32 %v200, %v207
    %v210 = vmul.f32 %v201, %v207
    %v211 = vmul.f32 %v202, %v207
    %v212 = vadd.f32 %v194, %v208
    %v213 = vadd.f32 %v195, %v209
    %v214 = vadd.f32 %v196, %v210
    %v215 = vadd.f32 %v197, %v211
    %v216 = vmul.f32 %v212, %v212
    %v217 = vmul.f32 %v213, %v213
    %v218 = vmul.f32 %v214, %v214
    %v219 = vmul.f32 %v215, %v215
    %v220 = vsel %vm83, %v216, 0.0
    %v221 = vsel %vm83, %v217, 0.0
    %v222 = vadd.f32 %v220, %v221
    %v223 = vsel %vm83, %v218, 0.0
    %v224 = vadd.f32 %v222, %v223
    %v225 = vsel %vm83, %v219, 0.0
    %v226 = vadd.f32 %v224, %v225
    %227 = vadd.xlane.f32.xlu0 %v226
    %v228 = vpop.xlane.xlu0 %227
    %v229 = vrot.slane %v228, 4
    %v230 = vadd.f32 %v228, %v229
    %v231 = vrot.slane %v230, 2
    %v232 = vadd.f32 %v230, %v231
    %v233 = vrot.slane %v232, 1
    %v234 = vadd.f32 %v232, %v233
    %s235 = vtos %v234
    %v236 = vstv %s235
    %v237 = vrsqrt.pop %v236
    %v238 = vmul.f32 %v236, %v237
    %vm239 = vcmp.eq.f32.partialorder %v236, inf
    %v240 = vsel %vm239, %v236, %v238
    %vm241 = vcmp.eq.f32.partialorder %v236, 0.0
    %v242 = vand.u32 %v236, 2147483648
    %v243 = vsel %vm241, %v242, %v240
    %s244 = vtos %v243
    %s245 = sadd.f32 %s244, 0.0001
    %v246 = vstv %s245
    %v247 = vrcp.pop %v246
    %s248 = vtos %v247
    %s249 = smul.f32 %s183, %s248
    %v250 = vstv %s249
    %v251 = vmul.f32 %v250, %v212
    %v252 = vmul.f32 %v250, %v213
    %v253 = vmul.f32 %v250, %v214
    %v254 = vmul.f32 %v250, %v215
    %v256 = vsel %vm83, %v251, 0
    %v259 = vsel %vm83, %v252, 0
    %v262 = vsel %vm83, %v253, 0
    %v265 = vsel %vm83, %v254, 0
    %267 = vmatprep.subr.mxu0 0.0
    %268 = vmatpush1.msra.mxu0 %v80
    %269 = vmatprep.subr.mxu0 0.0
    %270 = vmatpush1.msra.mxu0 %v81
    %271 = vmatprep.subr.mxu0 0.0
    %272 = vmatpush1.msra.mxu0 0.0
    %273 = vmatprep.subr.mxu0 0.0
    %274 = vmatpush1.msra.mxu0 0.0
    %275 = vmatprep.subr.mxu0 0.0
    %276 = vmatpush1.msra.mxu0 0.0
    %277 = vmatprep.subr.mxu0 0.0
    %278 = vmatpush1.msra.mxu0 0.0
    %279 = vmatprep.subr.mxu0 0.0
    %280 = vmatpush1.msra.mxu0 0.0
    %281 = vmatprep.subr.mxu0 0.0
    %282 = vmatpush1.msra.mxu0 0.0
    %283 = vmatprep.subr.mxu0 0.0
    %284 = vmatpush1.msra.mxu0 0.0
    %285 = vmatprep.subr.mxu0 0.0
    %286 = vmatpush1.msra.mxu0 0.0
    %287 = vmatprep.subr.mxu0 0.0
    %288 = vmatpush1.msra.mxu0 0.0
    %289 = vmatprep.subr.mxu0 0.0
    %290 = vmatpush1.msra.mxu0 0.0
    %291 = vmatprep.subr.mxu0 0.0
    %292 = vmatpush1.msra.mxu0 0.0
    %293 = vmatprep.subr.mxu0 0.0
    %294 = vmatpush1.msra.mxu0 0.0
    %295 = vmatprep.subr.mxu0 0.0
    %296 = vmatpush1.msra.mxu0 0.0
    %297 = vmatprep.subr.mxu0 0.0
    %298 = vmatpush1.msra.mxu0 0.0
    %299 = vmatprep.subr.mxu0 0.0
    %300 = vmatpush1.msra.mxu0 0.0
    %301 = vmatprep.subr.mxu0 0.0
    %302 = vmatpush1.msra.mxu0 0.0
    %303 = vmatprep.subr.mxu0 0.0
    %304 = vmatpush1.msra.mxu0 0.0
    %305 = vmatprep.subr.mxu0 0.0
    %306 = vmatpush1.msra.mxu0 0.0
    %307 = vmatprep.subr.mxu0 0.0
    %308 = vmatpush1.msra.mxu0 0.0
    %309 = vmatprep.subr.mxu0 0.0
    %310 = vmatpush1.msra.mxu0 0.0
    %311 = vmatprep.subr.mxu0 0.0
    %312 = vmatpush1.msra.mxu0 0.0
    %313 = vmatprep.subr.mxu0 0.0
    %314 = vmatpush1.msra.mxu0 0.0
    %315 = vmatprep.subr.mxu0 0.0
    %316 = vmatpush1.msra.mxu0 0.0
    %317 = vmatprep.subr.mxu0 0.0
    %318 = vmatpush1.msra.mxu0 0.0
    %319 = vmatprep.subr.mxu0 0.0
    %320 = vmatpush1.msra.mxu0 0.0
    %321 = vmatprep.subr.mxu0 0.0
    %322 = vmatpush1.msra.mxu0 0.0
    %323 = vmatprep.subr.mxu0 0.0
    %324 = vmatpush1.msra.mxu0 0.0
    %325 = vmatprep.subr.mxu0 0.0
    %326 = vmatpush1.msra.mxu0 0.0
    %327 = vmatprep.subr.mxu0 0.0
    %328 = vmatpush1.msra.mxu0 0.0
    %329 = vmatprep.subr.mxu0 0.0
    %330 = vmatpush1.msra.mxu0 0.0
    %331 = vmatprep.mubr.f32.mxu0 0.0
    %332 = vmatmul.mubr.f32.gmra.mrb[0].mxu0 %v256
    %v333 = vpop.f32.mrb[0].mxu0
    %v334 = vadd.f32 0.0, %v333
    %v335 = vpop.f32.mrb[0].mxu0
    %336 = vmatprep.mubr.f32.mxu0 0.0
    %337 = vmatmul.mubr.f32.gmra.mrb[0].mxu0 %v259
    %v338 = vpop.f32.mrb[0].mxu0
    %v339 = vadd.f32 0.0, %v338
    %v340 = vpop.f32.mrb[0].mxu0
    %341 = vmatprep.mubr.f32.mxu0 0.0
    %342 = vmatmul.mubr.f32.gmra.mrb[0].mxu0 %v262
    %v343 = vpop.f32.mrb[0].mxu0
    %v344 = vadd.f32 0.0, %v343
    %v345 = vpop.f32.mrb[0].mxu0
    %346 = vmatprep.mubr.f32.mxu0 0.0
    %347 = vmatmul.mubr.f32.gmra.mrb[0].mxu0 %v265
    %v348 = vpop.f32.mrb[0].mxu0
    %v349 = vadd.f32 0.0, %v348
    %v350 = vpop.f32.mrb[0].mxu0
    %351 = vdwg.mxu0
    %v353 = vsel %vm83, %v76, 0
    %v356 = vsel %vm83, %v77, 0
    %v359 = vsel %vm83, %v78, 0
    %v362 = vsel %vm83, %v79, 0
    %364 = vmatprep.subr.mxu0 0.0
    %365 = vmatpush1.msra.mxu0 %v80
    %366 = vmatprep.subr.mxu0 0.0
    %367 = vmatpush1.msra.mxu0 %v81
    %368 = vmatprep.subr.mxu0 0.0
    %369 = vmatpush1.msra.mxu0 0.0
    %370 = vmatprep.subr.mxu0 0.0
    %371 = vmatpush1.msra.mxu0 0.0
    %372 = vmatprep.subr.mxu0 0.0
    %373 = vmatpush1.msra.mxu0 0.0
    %374 = vmatprep.subr.mxu0 0.0
    %375 = vmatpush1.msra.mxu0 0.0
    %376 = vmatprep.subr.mxu0 0.0
    %377 = vmatpush1.msra.mxu0 0.0
    %378 = vmatprep.subr.mxu0 0.0
    %379 = vmatpush1.msra.mxu0 0.0
    %380 = vmatprep.subr.mxu0 0.0
    %381 = vmatpush1.msra.mxu0 0.0
    %382 = vmatprep.subr.mxu0 0.0
    %383 = vmatpush1.msra.mxu0 0.0
    %384 = vmatprep.subr.mxu0 0.0
    %385 = vmatpush1.msra.mxu0 0.0
    %386 = vmatprep.subr.mxu0 0.0
    %387 = vmatpush1.msra.mxu0 0.0
    %388 = vmatprep.subr.mxu0 0.0
    %389 = vmatpush1.msra.mxu0 0.0
    %390 = vmatprep.subr.mxu0 0.0
    %391 = vmatpush1.msra.mxu0 0.0
    %392 = vmatprep.subr.mxu0 0.0
    %393 = vmatpush1.msra.mxu0 0.0
    %394 = vmatprep.subr.mxu0 0.0
    %395 = vmatpush1.msra.mxu0 0.0
    %396 = vmatprep.subr.mxu0 0.0
    %397 = vmatpush1.msra.mxu0 0.0
    %398 = vmatprep.subr.mxu0 0.0
    %399 = vmatpush1.msra.mxu0 0.0
    %400 = vmatprep.subr.mxu0 0.0
    %401 = vmatpush1.msra.mxu0 0.0
    %402 = vmatprep.subr.mxu0 0.0
    %403 = vmatpush1.msra.mxu0 0.0
    %404 = vmatprep.subr.mxu0 0.0
    %405 = vmatpush1.msra.mxu0 0.0
    %406 = vmatprep.subr.mxu0 0.0
    %407 = vmatpush1.msra.mxu0 0.0
    %408 = vmatprep.subr.mxu0 0.0
    %409 = vmatpush1.msra.mxu0 0.0
    %410 = vmatprep.subr.mxu0 0.0
    %411 = vmatpush1.msra.mxu0 0.0
    %412 = vmatprep.subr.mxu0 0.0
    %413 = vmatpush1.msra.mxu0 0.0
    %414 = vmatprep.subr.mxu0 0.0
    %415 = vmatpush1.msra.mxu0 0.0
    %416 = vmatprep.subr.mxu0 0.0
    %417 = vmatpush1.msra.mxu0 0.0
    %418 = vmatprep.subr.mxu0 0.0
    %419 = vmatpush1.msra.mxu0 0.0
    %420 = vmatprep.subr.mxu0 0.0
    %421 = vmatpush1.msra.mxu0 0.0
    %422 = vmatprep.subr.mxu0 0.0
    %423 = vmatpush1.msra.mxu0 0.0
    %424 = vmatprep.subr.mxu0 0.0
    %425 = vmatpush1.msra.mxu0 0.0
    %426 = vmatprep.subr.mxu0 0.0
    %427 = vmatpush1.msra.mxu0 0.0
    %428 = vmatprep.mubr.f32.mxu0 0.0
    %429 = vmatmul.mubr.f32.gmra.mrb[0].mxu0 %v353
    %v430 = vpop.f32.mrb[0].mxu0
    %v431 = vadd.f32 0.0, %v430
    %v432 = vpop.f32.mrb[0].mxu0
    %433 = vmatprep.mubr.f32.mxu0 0.0
    %434 = vmatmul.mubr.f32.gmra.mrb[0].mxu0 %v356
    %v435 = vpop.f32.mrb[0].mxu0
    %v436 = vadd.f32 0.0, %v435
    %v437 = vpop.f32.mrb[0].mxu0
    %438 = vmatprep.mubr.f32.mxu0 0.0
    %439 = vmatmul.mubr.f32.gmra.mrb[0].mxu0 %v359
    %v440 = vpop.f32.mrb[0].mxu0
    %v441 = vadd.f32 0.0, %v440
    %v442 = vpop.f32.mrb[0].mxu0
    %443 = vmatprep.mubr.f32.mxu0 0.0
    %444 = vmatmul.mubr.f32.gmra.mrb[0].mxu0 %v362
    %v445 = vpop.f32.mrb[0].mxu0
    %v446 = vadd.f32 0.0, %v445
    %v447 = vpop.f32.mrb[0].mxu0
    %448 = vdwg.mxu0
    %v449 = vmul.f32 %v251, %v251
    %v450 = vmul.f32 %v252, %v252
    %v451 = vmul.f32 %v253, %v253
    %v452 = vmul.f32 %v254, %v254
    %v454 = vsel %vm83, %v449, 0
    %v457 = vsel %vm83, %v450, 0
    %v460 = vsel %vm83, %v451, 0
    %v463 = vsel %vm83, %v452, 0
    %465 = vmatprep.subr.mxu0 0.0
    %466 = vmatpush1.msra.mxu0 %v80
    %467 = vmatprep.subr.mxu0 0.0
    %468 = vmatpush1.msra.mxu0 %v81
    %469 = vmatprep.subr.mxu0 0.0
    %470 = vmatpush1.msra.mxu0 0.0
    %471 = vmatprep.subr.mxu0 0.0
    %472 = vmatpush1.msra.mxu0 0.0
    %473 = vmatprep.subr.mxu0 0.0
    %474 = vmatpush1.msra.mxu0 0.0
    %475 = vmatprep.subr.mxu0 0.0
    %476 = vmatpush1.msra.mxu0 0.0
    %477 = vmatprep.subr.mxu0 0.0
    %478 = vmatpush1.msra.mxu0 0.0
    %479 = vmatprep.subr.mxu0 0.0
    %480 = vmatpush1.msra.mxu0 0.0
    %481 = vmatprep.subr.mxu0 0.0
    %482 = vmatpush1.msra.mxu0 0.0
    %483 = vmatprep.subr.mxu0 0.0
    %484 = vmatpush1.msra.mxu0 0.0
    %485 = vmatprep.subr.mxu0 0.0
    %486 = vmatpush1.msra.mxu0 0.0
    %487 = vmatprep.subr.mxu0 0.0
    %488 = vmatpush1.msra.mxu0 0.0
    %489 = vmatprep.subr.mxu0 0.0
    %490 = vmatpush1.msra.mxu0 0.0
    %491 = vmatprep.subr.mxu0 0.0
    %492 = vmatpush1.msra.mxu0 0.0
    %493 = vmatprep.subr.mxu0 0.0
    %494 = vmatpush1.msra.mxu0 0.0
    %495 = vmatprep.subr.mxu0 0.0
    %496 = vmatpush1.msra.mxu0 0.0
    %497 = vmatprep.subr.mxu0 0.0
    %498 = vmatpush1.msra.mxu0 0.0
    %499 = vmatprep.subr.mxu0 0.0
    %500 = vmatpush1.msra.mxu0 0.0
    %501 = vmatprep.subr.mxu0 0.0
    %502 = vmatpush1.msra.mxu0 0.0
    %503 = vmatprep.subr.mxu0 0.0
    %504 = vmatpush1.msra.mxu0 0.0
    %505 = vmatprep.subr.mxu0 0.0
    %506 = vmatpush1.msra.mxu0 0.0
    %507 = vmatprep.subr.mxu0 0.0
    %508 = vmatpush1.msra.mxu0 0.0
    %509 = vmatprep.subr.mxu0 0.0
    %510 = vmatpush1.msra.mxu0 0.0
    %511 = vmatprep.subr.mxu0 0.0
    %512 = vmatpush1.msra.mxu0 0.0
    %513 = vmatprep.subr.mxu0 0.0
    %514 = vmatpush1.msra.mxu0 0.0
    %515 = vmatprep.subr.mxu0 0.0
    %516 = vmatpush1.msra.mxu0 0.0
    %517 = vmatprep.subr.mxu0 0.0
    %518 = vmatpush1.msra.mxu0 0.0
    %519 = vmatprep.subr.mxu0 0.0
    %520 = vmatpush1.msra.mxu0 0.0
    %521 = vmatprep.subr.mxu0 0.0
    %522 = vmatpush1.msra.mxu0 0.0
    %523 = vmatprep.subr.mxu0 0.0
    %524 = vmatpush1.msra.mxu0 0.0
    %525 = vmatprep.subr.mxu0 0.0
    %526 = vmatpush1.msra.mxu0 0.0
    %527 = vmatprep.subr.mxu0 0.0
    %528 = vmatpush1.msra.mxu0 0.0
    %529 = vmatprep.mubr.f32.mxu0 0.0
    %530 = vmatmul.mubr.f32.gmra.mrb[0].mxu0 %v454
    %v531 = vpop.f32.mrb[0].mxu0
    %v532 = vadd.f32 0.0, %v531
    %v533 = vpop.f32.mrb[0].mxu0
    %534 = vmatprep.mubr.f32.mxu0 0.0
    %535 = vmatmul.mubr.f32.gmra.mrb[0].mxu0 %v457
    %v536 = vpop.f32.mrb[0].mxu0
    %v537 = vadd.f32 0.0, %v536
    %v538 = vpop.f32.mrb[0].mxu0
    %539 = vmatprep.mubr.f32.mxu0 0.0
    %540 = vmatmul.mubr.f32.gmra.mrb[0].mxu0 %v460
    %v541 = vpop.f32.mrb[0].mxu0
    %v542 = vadd.f32 0.0, %v541
    %v543 = vpop.f32.mrb[0].mxu0
    %544 = vmatprep.mubr.f32.mxu0 0.0
    %545 = vmatmul.mubr.f32.gmra.mrb[0].mxu0 %v463
    %v546 = vpop.f32.mrb[0].mxu0
    %v547 = vadd.f32 0.0, %v546
    %v548 = vpop.f32.mrb[0].mxu0
    %549 = vdwg.mxu0
    %v550 = vmul.f32 %v76, %v76
    %v551 = vmul.f32 %v77, %v77
    %v552 = vmul.f32 %v78, %v78
    %v553 = vmul.f32 %v79, %v79
    %v555 = vsel %vm83, %v550, 0
    %v558 = vsel %vm83, %v551, 0
    %v561 = vsel %vm83, %v552, 0
    %v564 = vsel %vm83, %v553, 0
    %566 = vmatprep.subr.mxu0 0.0
    %567 = vmatpush1.msra.mxu0 %v80
    %568 = vmatprep.subr.mxu0 0.0
    %569 = vmatpush1.msra.mxu0 %v81
    %570 = vmatprep.subr.mxu0 0.0
    %571 = vmatpush1.msra.mxu0 0.0
    %572 = vmatprep.subr.mxu0 0.0
    %573 = vmatpush1.msra.mxu0 0.0
    %574 = vmatprep.subr.mxu0 0.0
    %575 = vmatpush1.msra.mxu0 0.0
    %576 = vmatprep.subr.mxu0 0.0
    %577 = vmatpush1.msra.mxu0 0.0
    %578 = vmatprep.subr.mxu0 0.0
    %579 = vmatpush1.msra.mxu0 0.0
    %580 = vmatprep.subr.mxu0 0.0
    %581 = vmatpush1.msra.mxu0 0.0
    %582 = vmatprep.subr.mxu0 0.0
    %583 = vmatpush1.msra.mxu0 0.0
    %584 = vmatprep.subr.mxu0 0.0
    %585 = vmatpush1.msra.mxu0 0.0
    %586 = vmatprep.subr.mxu0 0.0
    %587 = vmatpush1.msra.mxu0 0.0
    %588 = vmatprep.subr.mxu0 0.0
    %589 = vmatpush1.msra.mxu0 0.0
    %590 = vmatprep.subr.mxu0 0.0
    %591 = vmatpush1.msra.mxu0 0.0
    %592 = vmatprep.subr.mxu0 0.0
    %593 = vmatpush1.msra.mxu0 0.0
    %594 = vmatprep.subr.mxu0 0.0
    %595 = vmatpush1.msra.mxu0 0.0
    %596 = vmatprep.subr.mxu0 0.0
    %597 = vmatpush1.msra.mxu0 0.0
    %598 = vmatprep.subr.mxu0 0.0
    %599 = vmatpush1.msra.mxu0 0.0
    %600 = vmatprep.subr.mxu0 0.0
    %601 = vmatpush1.msra.mxu0 0.0
    %602 = vmatprep.subr.mxu0 0.0
    %603 = vmatpush1.msra.mxu0 0.0
    %604 = vmatprep.subr.mxu0 0.0
    %605 = vmatpush1.msra.mxu0 0.0
    %606 = vmatprep.subr.mxu0 0.0
    %607 = vmatpush1.msra.mxu0 0.0
    %608 = vmatprep.subr.mxu0 0.0
    %609 = vmatpush1.msra.mxu0 0.0
    %610 = vmatprep.subr.mxu0 0.0
    %611 = vmatpush1.msra.mxu0 0.0
    %612 = vmatprep.subr.mxu0 0.0
    %613 = vmatpush1.msra.mxu0 0.0
    %614 = vmatprep.subr.mxu0 0.0
    %615 = vmatpush1.msra.mxu0 0.0
    %616 = vmatprep.subr.mxu0 0.0
    %617 = vmatpush1.msra.mxu0 0.0
    %618 = vmatprep.subr.mxu0 0.0
    %619 = vmatpush1.msra.mxu0 0.0
    %620 = vmatprep.subr.mxu0 0.0
    %621 = vmatpush1.msra.mxu0 0.0
    %622 = vmatprep.subr.mxu0 0.0
    %623 = vmatpush1.msra.mxu0 0.0
    %624 = vmatprep.subr.mxu0 0.0
    %625 = vmatpush1.msra.mxu0 0.0
    %626 = vmatprep.subr.mxu0 0.0
    %627 = vmatpush1.msra.mxu0 0.0
    %628 = vmatprep.subr.mxu0 0.0
    %629 = vmatpush1.msra.mxu0 0.0
    %630 = vmatprep.mubr.f32.mxu0 0.0
    %631 = vmatmul.mubr.f32.gmra.mrb[0].mxu0 %v555
    %v632 = vpop.f32.mrb[0].mxu0
    %v633 = vadd.f32 0.0, %v632
    %v634 = vpop.f32.mrb[0].mxu0
    %635 = vmatprep.mubr.f32.mxu0 0.0
    %636 = vmatmul.mubr.f32.gmra.mrb[0].mxu0 %v558
    %v637 = vpop.f32.mrb[0].mxu0
    %v638 = vadd.f32 0.0, %v637
    %v639 = vpop.f32.mrb[0].mxu0
    %640 = vmatprep.mubr.f32.mxu0 0.0
    %641 = vmatmul.mubr.f32.gmra.mrb[0].mxu0 %v561
    %v642 = vpop.f32.mrb[0].mxu0
    %v643 = vadd.f32 0.0, %v642
    %v644 = vpop.f32.mrb[0].mxu0
    %645 = vmatprep.mubr.f32.mxu0 0.0
    %646 = vmatmul.mubr.f32.gmra.mrb[0].mxu0 %v564
    %v647 = vpop.f32.mrb[0].mxu0
    %v648 = vadd.f32 0.0, %v647
    %v649 = vpop.f32.mrb[0].mxu0
    %650 = vdwg.mxu0
    %v651 = vmul.f32 %v251, %v76
    %v652 = vmul.f32 %v252, %v77
    %v653 = vmul.f32 %v253, %v78
    %v654 = vmul.f32 %v254, %v79
    %v656 = vsel %vm83, %v651, 0
    %v659 = vsel %vm83, %v652, 0
    %v662 = vsel %vm83, %v653, 0
    %v665 = vsel %vm83, %v654, 0
    %667 = vmatprep.subr.mxu0 0.0
    %668 = vmatpush1.msra.mxu0 %v80
    %669 = vmatprep.subr.mxu0 0.0
    %670 = vmatpush1.msra.mxu0 %v81
    %671 = vmatprep.subr.mxu0 0.0
    %672 = vmatpush1.msra.mxu0 0.0
    %673 = vmatprep.subr.mxu0 0.0
    %674 = vmatpush1.msra.mxu0 0.0
    %675 = vmatprep.subr.mxu0 0.0
    %676 = vmatpush1.msra.mxu0 0.0
    %677 = vmatprep.subr.mxu0 0.0
    %678 = vmatpush1.msra.mxu0 0.0
    %679 = vmatprep.subr.mxu0 0.0
    %680 = vmatpush1.msra.mxu0 0.0
    %681 = vmatprep.subr.mxu0 0.0
    %682 = vmatpush1.msra.mxu0 0.0
    %683 = vmatprep.subr.mxu0 0.0
    %684 = vmatpush1.msra.mxu0 0.0
    %685 = vmatprep.subr.mxu0 0.0
    %686 = vmatpush1.msra.mxu0 0.0
    %687 = vmatprep.subr.mxu0 0.0
    %688 = vmatpush1.msra.mxu0 0.0
    %689 = vmatprep.subr.mxu0 0.0
    %690 = vmatpush1.msra.mxu0 0.0
    %691 = vmatprep.subr.mxu0 0.0
    %692 = vmatpush1.msra.mxu0 0.0
    %693 = vmatprep.subr.mxu0 0.0
    %694 = vmatpush1.msra.mxu0 0.0
    %695 = vmatprep.subr.mxu0 0.0
    %696 = vmatpush1.msra.mxu0 0.0
    %697 = vmatprep.subr.mxu0 0.0
    %698 = vmatpush1.msra.mxu0 0.0
    %699 = vmatprep.subr.mxu0 0.0
    %700 = vmatpush1.msra.mxu0 0.0
    %701 = vmatprep.subr.mxu0 0.0
    %702 = vmatpush1.msra.mxu0 0.0
    %703 = vmatprep.subr.mxu0 0.0
    %704 = vmatpush1.msra.mxu0 0.0
    %705 = vmatprep.subr.mxu0 0.0
    %706 = vmatpush1.msra.mxu0 0.0
    %707 = vmatprep.subr.mxu0 0.0
    %708 = vmatpush1.msra.mxu0 0.0
    %709 = vmatprep.subr.mxu0 0.0
    %710 = vmatpush1.msra.mxu0 0.0
    %711 = vmatprep.subr.mxu0 0.0
    %712 = vmatpush1.msra.mxu0 0.0
    %713 = vmatprep.subr.mxu0 0.0
    %714 = vmatpush1.msra.mxu0 0.0
    %715 = vmatprep.subr.mxu0 0.0
    %716 = vmatpush1.msra.mxu0 0.0
    %717 = vmatprep.subr.mxu0 0.0
    %718 = vmatpush1.msra.mxu0 0.0
    %719 = vmatprep.subr.mxu0 0.0
    %720 = vmatpush1.msra.mxu0 0.0
    %721 = vmatprep.subr.mxu0 0.0
    %722 = vmatpush1.msra.mxu0 0.0
    %723 = vmatprep.subr.mxu0 0.0
    %724 = vmatpush1.msra.mxu0 0.0
    %725 = vmatprep.subr.mxu0 0.0
    %726 = vmatpush1.msra.mxu0 0.0
    %727 = vmatprep.subr.mxu0 0.0
    %728 = vmatpush1.msra.mxu0 0.0
    %729 = vmatprep.subr.mxu0 0.0
    %730 = vmatpush1.msra.mxu0 0.0
    %731 = vmatprep.mubr.f32.mxu0 0.0
    %732 = vmatmul.mubr.f32.gmra.mrb[0].mxu0 %v656
    %v733 = vpop.f32.mrb[0].mxu0
    %v734 = vadd.f32 0.0, %v733
    %v735 = vpop.f32.mrb[0].mxu0
    %736 = vmatprep.mubr.f32.mxu0 0.0
    %737 = vmatmul.mubr.f32.gmra.mrb[0].mxu0 %v659
    %v738 = vpop.f32.mrb[0].mxu0
    %v739 = vadd.f32 0.0, %v738
    %v740 = vpop.f32.mrb[0].mxu0
    %741 = vmatprep.mubr.f32.mxu0 0.0
    %742 = vmatmul.mubr.f32.gmra.mrb[0].mxu0 %v662
    %v743 = vpop.f32.mrb[0].mxu0
    %v744 = vadd.f32 0.0, %v743
    %v745 = vpop.f32.mrb[0].mxu0
    %746 = vmatprep.mubr.f32.mxu0 0.0
    %747 = vmatmul.mubr.f32.gmra.mrb[0].mxu0 %v665
    %v748 = vpop.f32.mrb[0].mxu0
    %v749 = vadd.f32 0.0, %v748
    %v750 = vpop.f32.mrb[0].mxu0
    %751 = vdwg.mxu0
    %v753 = vsel %vm83, %v82, 0
    %755 = vmatprep.subr.mxu0 0.0
    %756 = vmatpush1.msra.mxu0 %v334
    %757 = vmatprep.subr.mxu0 0.0
    %758 = vmatpush1.msra.mxu0 %v339
    %759 = vmatprep.subr.mxu0 0.0
    %760 = vmatpush1.msra.mxu0 0.0
    %761 = vmatprep.subr.mxu0 0.0
    %762 = vmatpush1.msra.mxu0 0.0
    %763 = vmatprep.subr.mxu0 0.0
    %764 = vmatpush1.msra.mxu0 0.0
    %765 = vmatprep.subr.mxu0 0.0
    %766 = vmatpush1.msra.mxu0 0.0
    %767 = vmatprep.subr.mxu0 0.0
    %768 = vmatpush1.msra.mxu0 0.0
    %769 = vmatprep.subr.mxu0 0.0
    %770 = vmatpush1.msra.mxu0 0.0
    %771 = vmatprep.subr.mxu0 0.0
    %772 = vmatpush1.msra.mxu0 0.0
    %773 = vmatprep.subr.mxu0 0.0
    %774 = vmatpush1.msra.mxu0 0.0
    %775 = vmatprep.subr.mxu0 0.0
    %776 = vmatpush1.msra.mxu0 0.0
    %777 = vmatprep.subr.mxu0 0.0
    %778 = vmatpush1.msra.mxu0 0.0
    %779 = vmatprep.subr.mxu0 0.0
    %780 = vmatpush1.msra.mxu0 0.0
    %781 = vmatprep.subr.mxu0 0.0
    %782 = vmatpush1.msra.mxu0 0.0
    %783 = vmatprep.subr.mxu0 0.0
    %784 = vmatpush1.msra.mxu0 0.0
    %785 = vmatprep.subr.mxu0 0.0
    %786 = vmatpush1.msra.mxu0 0.0
    %787 = vmatprep.subr.mxu0 0.0
    %788 = vmatpush1.msra.mxu0 0.0
    %789 = vmatprep.subr.mxu0 0.0
    %790 = vmatpush1.msra.mxu0 0.0
    %791 = vmatprep.subr.mxu0 0.0
    %792 = vmatpush1.msra.mxu0 0.0
    %793 = vmatprep.subr.mxu0 0.0
    %794 = vmatpush1.msra.mxu0 0.0
    %795 = vmatprep.subr.mxu0 0.0
    %796 = vmatpush1.msra.mxu0 0.0
    %797 = vmatprep.subr.mxu0 0.0
    %798 = vmatpush1.msra.mxu0 0.0
    %799 = vmatprep.subr.mxu0 0.0
    %800 = vmatpush1.msra.mxu0 0.0
    %801 = vmatprep.subr.mxu0 0.0
    %802 = vmatpush1.msra.mxu0 0.0
    %803 = vmatprep.subr.mxu0 0.0
    %804 = vmatpush1.msra.mxu0 0.0
    %805 = vmatprep.subr.mxu0 0.0
    %806 = vmatpush1.msra.mxu0 0.0
    %807 = vmatprep.subr.mxu0 0.0
    %808 = vmatpush1.msra.mxu0 0.0
    %809 = vmatprep.subr.mxu0 0.0
    %810 = vmatpush1.msra.mxu0 0.0
    %811 = vmatprep.subr.mxu0 0.0
    %812 = vmatpush1.msra.mxu0 0.0
    %813 = vmatprep.subr.mxu0 0.0
    %814 = vmatpush1.msra.mxu0 0.0
    %815 = vmatprep.subr.mxu0 0.0
    %816 = vmatpush1.msra.mxu0 0.0
    %817 = vmatprep.subr.mxu0 0.0
    %818 = vmatpush1.msra.mxu0 0.0
    %819 = vmatprep.mubr.f32.mxu0 0.0
    %820 = vmatmul.mubr.f32.gmra.mrb[0].mxu0 %v753
    %v821 = vpop.f32.mrb[0].mxu0
    %v822 = vadd.f32 0.0, %v821
    %v823 = vpop.f32.mrb[0].mxu0
    %824 = vdwg.mxu0
    %825 = vmatprep.subr.mxu0 0.0
    %826 = vmatpush1.msra.mxu0 %v431
    %827 = vmatprep.subr.mxu0 0.0
    %828 = vmatpush1.msra.mxu0 %v436
    %829 = vmatprep.subr.mxu0 0.0
    %830 = vmatpush1.msra.mxu0 0.0
    %831 = vmatprep.subr.mxu0 0.0
    %832 = vmatpush1.msra.mxu0 0.0
    %833 = vmatprep.subr.mxu0 0.0
    %834 = vmatpush1.msra.mxu0 0.0
    %835 = vmatprep.subr.mxu0 0.0
    %836 = vmatpush1.msra.mxu0 0.0
    %837 = vmatprep.subr.mxu0 0.0
    %838 = vmatpush1.msra.mxu0 0.0
    %839 = vmatprep.subr.mxu0 0.0
    %840 = vmatpush1.msra.mxu0 0.0
    %841 = vmatprep.subr.mxu0 0.0
    %842 = vmatpush1.msra.mxu0 0.0
    %843 = vmatprep.subr.mxu0 0.0
    %844 = vmatpush1.msra.mxu0 0.0
    %845 = vmatprep.subr.mxu0 0.0
    %846 = vmatpush1.msra.mxu0 0.0
    %847 = vmatprep.subr.mxu0 0.0
    %848 = vmatpush1.msra.mxu0 0.0
    %849 = vmatprep.subr.mxu0 0.0
    %850 = vmatpush1.msra.mxu0 0.0
    %851 = vmatprep.subr.mxu0 0.0
    %852 = vmatpush1.msra.mxu0 0.0
    %853 = vmatprep.subr.mxu0 0.0
    %854 = vmatpush1.msra.mxu0 0.0
    %855 = vmatprep.subr.mxu0 0.0
    %856 = vmatpush1.msra.mxu0 0.0
    %857 = vmatprep.subr.mxu0 0.0
    %858 = vmatpush1.msra.mxu0 0.0
    %859 = vmatprep.subr.mxu0 0.0
    %860 = vmatpush1.msra.mxu0 0.0
    %861 = vmatprep.subr.mxu0 0.0
    %862 = vmatpush1.msra.mxu0 0.0
    %863 = vmatprep.subr.mxu0 0.0
    %864 = vmatpush1.msra.mxu0 0.0
    %865 = vmatprep.subr.mxu0 0.0
    %866 = vmatpush1.msra.mxu0 0.0
    %867 = vmatprep.subr.mxu0 0.0
    %868 = vmatpush1.msra.mxu0 0.0
    %869 = vmatprep.subr.mxu0 0.0
    %870 = vmatpush1.msra.mxu0 0.0
    %871 = vmatprep.subr.mxu0 0.0
    %872 = vmatpush1.msra.mxu0 0.0
    %873 = vmatprep.subr.mxu0 0.0
    %874 = vmatpush1.msra.mxu0 0.0
    %875 = vmatprep.subr.mxu0 0.0
    %876 = vmatpush1.msra.mxu0 0.0
    %877 = vmatprep.subr.mxu0 0.0
    %878 = vmatpush1.msra.mxu0 0.0
    %879 = vmatprep.subr.mxu0 0.0
    %880 = vmatpush1.msra.mxu0 0.0
    %881 = vmatprep.subr.mxu0 0.0
    %882 = vmatpush1.msra.mxu0 0.0
    %883 = vmatprep.subr.mxu0 0.0
    %884 = vmatpush1.msra.mxu0 0.0
    %885 = vmatprep.subr.mxu0 0.0
    %886 = vmatpush1.msra.mxu0 0.0
    %887 = vmatprep.subr.mxu0 0.0
    %888 = vmatpush1.msra.mxu0 0.0
    %889 = vmatprep.mubr.f32.mxu0 0.0
    %890 = vmatmul.mubr.f32.gmra.mrb[0].mxu0 %v753
    %v891 = vpop.f32.mrb[0].mxu0
    %v892 = vadd.f32 0.0, %v891
    %v893 = vpop.f32.mrb[0].mxu0
    %894 = vdwg.mxu0
    %895 = vmatprep.subr.mxu0 0.0
    %896 = vmatpush1.msra.mxu0 %v532
    %897 = vmatprep.subr.mxu0 0.0
    %898 = vmatpush1.msra.mxu0 %v537
    %899 = vmatprep.subr.mxu0 0.0
    %900 = vmatpush1.msra.mxu0 0.0
    %901 = vmatprep.subr.mxu0 0.0
    %902 = vmatpush1.msra.mxu0 0.0
    %903 = vmatprep.subr.mxu0 0.0
    %904 = vmatpush1.msra.mxu0 0.0
    %905 = vmatprep.subr.mxu0 0.0
    %906 = vmatpush1.msra.mxu0 0.0
    %907 = vmatprep.subr.mxu0 0.0
    %908 = vmatpush1.msra.mxu0 0.0
    %909 = vmatprep.subr.mxu0 0.0
    %910 = vmatpush1.msra.mxu0 0.0
    %911 = vmatprep.subr.mxu0 0.0
    %912 = vmatpush1.msra.mxu0 0.0
    %913 = vmatprep.subr.mxu0 0.0
    %914 = vmatpush1.msra.mxu0 0.0
    %915 = vmatprep.subr.mxu0 0.0
    %916 = vmatpush1.msra.mxu0 0.0
    %917 = vmatprep.subr.mxu0 0.0
    %918 = vmatpush1.msra.mxu0 0.0
    %919 = vmatprep.subr.mxu0 0.0
    %920 = vmatpush1.msra.mxu0 0.0
    %921 = vmatprep.subr.mxu0 0.0
    %922 = vmatpush1.msra.mxu0 0.0
    %923 = vmatprep.subr.mxu0 0.0
    %924 = vmatpush1.msra.mxu0 0.0
    %925 = vmatprep.subr.mxu0 0.0
    %926 = vmatpush1.msra.mxu0 0.0
    %927 = vmatprep.subr.mxu0 0.0
    %928 = vmatpush1.msra.mxu0 0.0
    %929 = vmatprep.subr.mxu0 0.0
    %930 = vmatpush1.msra.mxu0 0.0
    %931 = vmatprep.subr.mxu0 0.0
    %932 = vmatpush1.msra.mxu0 0.0
    %933 = vmatprep.subr.mxu0 0.0
    %934 = vmatpush1.msra.mxu0 0.0
    %935 = vmatprep.subr.mxu0 0.0
    %936 = vmatpush1.msra.mxu0 0.0
    %937 = vmatprep.subr.mxu0 0.0
    %938 = vmatpush1.msra.mxu0 0.0
    %939 = vmatprep.subr.mxu0 0.0
    %940 = vmatpush1.msra.mxu0 0.0
    %941 = vmatprep.subr.mxu0 0.0
    %942 = vmatpush1.msra.mxu0 0.0
    %943 = vmatprep.subr.mxu0 0.0
    %944 = vmatpush1.msra.mxu0 0.0
    %945 = vmatprep.subr.mxu0 0.0
    %946 = vmatpush1.msra.mxu0 0.0
    %947 = vmatprep.subr.mxu0 0.0
    %948 = vmatpush1.msra.mxu0 0.0
    %949 = vmatprep.subr.mxu0 0.0
    %950 = vmatpush1.msra.mxu0 0.0
    %951 = vmatprep.subr.mxu0 0.0
    %952 = vmatpush1.msra.mxu0 0.0
    %953 = vmatprep.subr.mxu0 0.0
    %954 = vmatpush1.msra.mxu0 0.0
    %955 = vmatprep.subr.mxu0 0.0
    %956 = vmatpush1.msra.mxu0 0.0
    %957 = vmatprep.subr.mxu0 0.0
    %958 = vmatpush1.msra.mxu0 0.0
    %959 = vmatprep.mubr.f32.mxu0 0.0
    %960 = vmatmul.mubr.f32.gmra.mrb[0].mxu0 %v753
    %v961 = vpop.f32.mrb[0].mxu0
    %v962 = vadd.f32 0.0, %v961
    %v963 = vpop.f32.mrb[0].mxu0
    %964 = vdwg.mxu0
    %965 = vmatprep.subr.mxu0 0.0
    %966 = vmatpush1.msra.mxu0 %v633
    %967 = vmatprep.subr.mxu0 0.0
    %968 = vmatpush1.msra.mxu0 %v638
    %969 = vmatprep.subr.mxu0 0.0
    %970 = vmatpush1.msra.mxu0 0.0
    %971 = vmatprep.subr.mxu0 0.0
    %972 = vmatpush1.msra.mxu0 0.0
    %973 = vmatprep.subr.mxu0 0.0
    %974 = vmatpush1.msra.mxu0 0.0
    %975 = vmatprep.subr.mxu0 0.0
    %976 = vmatpush1.msra.mxu0 0.0
    %977 = vmatprep.subr.mxu0 0.0
    %978 = vmatpush1.msra.mxu0 0.0
    %979 = vmatprep.subr.mxu0 0.0
    %980 = vmatpush1.msra.mxu0 0.0
    %981 = vmatprep.subr.mxu0 0.0
    %982 = vmatpush1.msra.mxu0 0.0
    %983 = vmatprep.subr.mxu0 0.0
    %984 = vmatpush1.msra.mxu0 0.0
    %985 = vmatprep.subr.mxu0 0.0
    %986 = vmatpush1.msra.mxu0 0.0
    %987 = vmatprep.subr.mxu0 0.0
    %988 = vmatpush1.msra.mxu0 0.0
    %989 = vmatprep.subr.mxu0 0.0
    %990 = vmatpush1.msra.mxu0 0.0
    %991 = vmatprep.subr.mxu0 0.0
    %992 = vmatpush1.msra.mxu0 0.0
    %993 = vmatprep.subr.mxu0 0.0
    %994 = vmatpush1.msra.mxu0 0.0
    %995 = vmatprep.subr.mxu0 0.0
    %996 = vmatpush1.msra.mxu0 0.0
    %997 = vmatprep.subr.mxu0 0.0
    %998 = vmatpush1.msra.mxu0 0.0
    %999 = vmatprep.subr.mxu0 0.0
    %1000 = vmatpush1.msra.mxu0 0.0
    %1001 = vmatprep.subr.mxu0 0.0
    %1002 = vmatpush1.msra.mxu0 0.0
    %1003 = vmatprep.subr.mxu0 0.0
    %1004 = vmatpush1.msra.mxu0 0.0
    %1005 = vmatprep.subr.mxu0 0.0
    %1006 = vmatpush1.msra.mxu0 0.0
    %1007 = vmatprep.subr.mxu0 0.0
    %1008 = vmatpush1.msra.mxu0 0.0
    %1009 = vmatprep.subr.mxu0 0.0
    %1010 = vmatpush1.msra.mxu0 0.0
    %1011 = vmatprep.subr.mxu0 0.0
    %1012 = vmatpush1.msra.mxu0 0.0
    %1013 = vmatprep.subr.mxu0 0.0
    %1014 = vmatpush1.msra.mxu0 0.0
    %1015 = vmatprep.subr.mxu0 0.0
    %1016 = vmatpush1.msra.mxu0 0.0
    %1017 = vmatprep.subr.mxu0 0.0
    %1018 = vmatpush1.msra.mxu0 0.0
    %1019 = vmatprep.subr.mxu0 0.0
    %1020 = vmatpush1.msra.mxu0 0.0
    %1021 = vmatprep.subr.mxu0 0.0
    %1022 = vmatpush1.msra.mxu0 0.0
    %1023 = vmatprep.subr.mxu0 0.0
    %1024 = vmatpush1.msra.mxu0 0.0
    %1025 = vmatprep.subr.mxu0 0.0
    %1026 = vmatpush1.msra.mxu0 0.0
    %1027 = vmatprep.subr.mxu0 0.0
    %1028 = vmatpush1.msra.mxu0 0.0
    %1029 = vmatprep.mubr.f32.mxu0 0.0
    %1030 = vmatmul.mubr.f32.gmra.mrb[0].mxu0 %v753
    %v1031 = vpop.f32.mrb[0].mxu0
    %v1032 = vadd.f32 0.0, %v1031
    %v1033 = vpop.f32.mrb[0].mxu0
    %1034 = vdwg.mxu0
    %1035 = vmatprep.subr.mxu0 0.0
    %1036 = vmatpush1.msra.mxu0 %v734
    %1037 = vmatprep.subr.mxu0 0.0
    %1038 = vmatpush1.msra.mxu0 %v739
    %1039 = vmatprep.subr.mxu0 0.0
    %1040 = vmatpush1.msra.mxu0 0.0
    %1041 = vmatprep.subr.mxu0 0.0
    %1042 = vmatpush1.msra.mxu0 0.0
    %1043 = vmatprep.subr.mxu0 0.0
    %1044 = vmatpush1.msra.mxu0 0.0
    %1045 = vmatprep.subr.mxu0 0.0
    %1046 = vmatpush1.msra.mxu0 0.0
    %1047 = vmatprep.subr.mxu0 0.0
    %1048 = vmatpush1.msra.mxu0 0.0
    %1049 = vmatprep.subr.mxu0 0.0
    %1050 = vmatpush1.msra.mxu0 0.0
    %1051 = vmatprep.subr.mxu0 0.0
    %1052 = vmatpush1.msra.mxu0 0.0
    %1053 = vmatprep.subr.mxu0 0.0
    %1054 = vmatpush1.msra.mxu0 0.0
    %1055 = vmatprep.subr.mxu0 0.0
    %1056 = vmatpush1.msra.mxu0 0.0
    %1057 = vmatprep.subr.mxu0 0.0
    %1058 = vmatpush1.msra.mxu0 0.0
    %1059 = vmatprep.subr.mxu0 0.0
    %1060 = vmatpush1.msra.mxu0 0.0
    %1061 = vmatprep.subr.mxu0 0.0
    %1062 = vmatpush1.msra.mxu0 0.0
    %1063 = vmatprep.subr.mxu0 0.0
    %1064 = vmatpush1.msra.mxu0 0.0
    %1065 = vmatprep.subr.mxu0 0.0
    %1066 = vmatpush1.msra.mxu0 0.0
    %1067 = vmatprep.subr.mxu0 0.0
    %1068 = vmatpush1.msra.mxu0 0.0
    %1069 = vmatprep.subr.mxu0 0.0
    %1070 = vmatpush1.msra.mxu0 0.0
    %1071 = vmatprep.subr.mxu0 0.0
    %1072 = vmatpush1.msra.mxu0 0.0
    %1073 = vmatprep.subr.mxu0 0.0
    %1074 = vmatpush1.msra.mxu0 0.0
    %1075 = vmatprep.subr.mxu0 0.0
    %1076 = vmatpush1.msra.mxu0 0.0
    %1077 = vmatprep.subr.mxu0 0.0
    %1078 = vmatpush1.msra.mxu0 0.0
    %1079 = vmatprep.subr.mxu0 0.0
    %1080 = vmatpush1.msra.mxu0 0.0
    %1081 = vmatprep.subr.mxu0 0.0
    %1082 = vmatpush1.msra.mxu0 0.0
    %1083 = vmatprep.subr.mxu0 0.0
    %1084 = vmatpush1.msra.mxu0 0.0
    %1085 = vmatprep.subr.mxu0 0.0
    %1086 = vmatpush1.msra.mxu0 0.0
    %1087 = vmatprep.subr.mxu0 0.0
    %1088 = vmatpush1.msra.mxu0 0.0
    %1089 = vmatprep.subr.mxu0 0.0
    %1090 = vmatpush1.msra.mxu0 0.0
    %1091 = vmatprep.subr.mxu0 0.0
    %1092 = vmatpush1.msra.mxu0 0.0
    %1093 = vmatprep.subr.mxu0 0.0
    %1094 = vmatpush1.msra.mxu0 0.0
    %1095 = vmatprep.subr.mxu0 0.0
    %1096 = vmatpush1.msra.mxu0 0.0
    %1097 = vmatprep.subr.mxu0 0.0
    %1098 = vmatpush1.msra.mxu0 0.0
    %1099 = vmatprep.mubr.f32.mxu0 0.0
    %1100 = vmatmul.mubr.f32.gmra.mrb[0].mxu0 %v753
    %v1101 = vpop.f32.mrb[0].mxu0
    %v1102 = vadd.f32 0.0, %v1101
    %v1103 = vpop.f32.mrb[0].mxu0
    %1104 = vdwg.mxu0
    %v1105 = vmul.f32 %v822, %v822
    %v1106 = vsub.f32 %v962, %v1105
    %v1107 = vmul.f32 %v892, %v892
    %v1108 = vsub.f32 %v1032, %v1107
    %v1109 = vmul.f32 %v822, %v892
    %v1110 = vsub.f32 %v1102, %v1109
    %v1111 = vadd.f32 %v1106, %v1108
    %v1112 = vadd.f32 %v1111, 0.0009
    %v1113 = vrcp.pop %v1112
    %v1114 = vmul.f32 %v1112, %v1113
    %v1115 = vsub.f32 2.0, %v1114
    %v1116 = vmul.f32 %v1113, %v1115
    %v1117 = vmul.f32 %v1110, 2.0
    %v1118 = vadd.f32 %v1117, 0.0009
    %v1119 = vmul.f32 %v1118, %v1116
    %vm1120 = vcmask 46080
    %v1121 = vsel %vm1120, %v1119, 0.0
    %1122 = vadd.xlane.f32.xlu0 %v1121
    %v1123 = vpop.xlane.xlu0 %1122
    %v1124 = vrot.slane %v1123, 4
    %v1125 = vadd.f32 %v1123, %v1124
    %v1126 = vrot.slane %v1125, 2
    %v1127 = vadd.f32 %v1125, %v1126
    %v1128 = vrot.slane %v1127, 1
    %v1129 = vadd.f32 %v1127, %v1128
    %s1130 = vtos %v1129
    %s1131 = sadd.f32 %s1130, 0.0
    %1132 = vmatprep.subr.mxu0 0.0
    %1133 = vmatpush1.msra.mxu0 %v344
    %1134 = vmatprep.subr.mxu0 0.0
    %1135 = vmatpush1.msra.mxu0 %v349
    %1136 = vmatprep.subr.mxu0 0.0
    %1137 = vmatpush1.msra.mxu0 0.0
    %1138 = vmatprep.subr.mxu0 0.0
    %1139 = vmatpush1.msra.mxu0 0.0
    %1140 = vmatprep.subr.mxu0 0.0
    %1141 = vmatpush1.msra.mxu0 0.0
    %1142 = vmatprep.subr.mxu0 0.0
    %1143 = vmatpush1.msra.mxu0 0.0
    %1144 = vmatprep.subr.mxu0 0.0
    %1145 = vmatpush1.msra.mxu0 0.0
    %1146 = vmatprep.subr.mxu0 0.0
    %1147 = vmatpush1.msra.mxu0 0.0
    %1148 = vmatprep.subr.mxu0 0.0
    %1149 = vmatpush1.msra.mxu0 0.0
    %1150 = vmatprep.subr.mxu0 0.0
    %1151 = vmatpush1.msra.mxu0 0.0
    %1152 = vmatprep.subr.mxu0 0.0
    %1153 = vmatpush1.msra.mxu0 0.0
    %1154 = vmatprep.subr.mxu0 0.0
    %1155 = vmatpush1.msra.mxu0 0.0
    %1156 = vmatprep.subr.mxu0 0.0
    %1157 = vmatpush1.msra.mxu0 0.0
    %1158 = vmatprep.subr.mxu0 0.0
    %1159 = vmatpush1.msra.mxu0 0.0
    %1160 = vmatprep.subr.mxu0 0.0
    %1161 = vmatpush1.msra.mxu0 0.0
    %1162 = vmatprep.subr.mxu0 0.0
    %1163 = vmatpush1.msra.mxu0 0.0
    %1164 = vmatprep.subr.mxu0 0.0
    %1165 = vmatpush1.msra.mxu0 0.0
    %1166 = vmatprep.subr.mxu0 0.0
    %1167 = vmatpush1.msra.mxu0 0.0
    %1168 = vmatprep.subr.mxu0 0.0
    %1169 = vmatpush1.msra.mxu0 0.0
    %1170 = vmatprep.subr.mxu0 0.0
    %1171 = vmatpush1.msra.mxu0 0.0
    %1172 = vmatprep.subr.mxu0 0.0
    %1173 = vmatpush1.msra.mxu0 0.0
    %1174 = vmatprep.subr.mxu0 0.0
    %1175 = vmatpush1.msra.mxu0 0.0
    %1176 = vmatprep.subr.mxu0 0.0
    %1177 = vmatpush1.msra.mxu0 0.0
    %1178 = vmatprep.subr.mxu0 0.0
    %1179 = vmatpush1.msra.mxu0 0.0
    %1180 = vmatprep.subr.mxu0 0.0
    %1181 = vmatpush1.msra.mxu0 0.0
    %1182 = vmatprep.subr.mxu0 0.0
    %1183 = vmatpush1.msra.mxu0 0.0
    %1184 = vmatprep.subr.mxu0 0.0
    %1185 = vmatpush1.msra.mxu0 0.0
    %1186 = vmatprep.subr.mxu0 0.0
    %1187 = vmatpush1.msra.mxu0 0.0
    %1188 = vmatprep.subr.mxu0 0.0
    %1189 = vmatpush1.msra.mxu0 0.0
    %1190 = vmatprep.subr.mxu0 0.0
    %1191 = vmatpush1.msra.mxu0 0.0
    %1192 = vmatprep.subr.mxu0 0.0
    %1193 = vmatpush1.msra.mxu0 0.0
    %1194 = vmatprep.subr.mxu0 0.0
    %1195 = vmatpush1.msra.mxu0 0.0
    %1196 = vmatprep.mubr.f32.mxu0 0.0
    %1197 = vmatmul.mubr.f32.gmra.mrb[0].mxu0 %v753
    %v1198 = vpop.f32.mrb[0].mxu0
    %v1199 = vadd.f32 0.0, %v1198
    %v1200 = vpop.f32.mrb[0].mxu0
    %1201 = vdwg.mxu0
    %1202 = vmatprep.subr.mxu0 0.0
    %1203 = vmatpush1.msra.mxu0 %v441
    %1204 = vmatprep.subr.mxu0 0.0
    %1205 = vmatpush1.msra.mxu0 %v446
    %1206 = vmatprep.subr.mxu0 0.0
    %1207 = vmatpush1.msra.mxu0 0.0
    %1208 = vmatprep.subr.mxu0 0.0
    %1209 = vmatpush1.msra.mxu0 0.0
    %1210 = vmatprep.subr.mxu0 0.0
    %1211 = vmatpush1.msra.mxu0 0.0
    %1212 = vmatprep.subr.mxu0 0.0
    %1213 = vmatpush1.msra.mxu0 0.0
    %1214 = vmatprep.subr.mxu0 0.0
    %1215 = vmatpush1.msra.mxu0 0.0
    %1216 = vmatprep.subr.mxu0 0.0
    %1217 = vmatpush1.msra.mxu0 0.0
    %1218 = vmatprep.subr.mxu0 0.0
    %1219 = vmatpush1.msra.mxu0 0.0
    %1220 = vmatprep.subr.mxu0 0.0
    %1221 = vmatpush1.msra.mxu0 0.0
    %1222 = vmatprep.subr.mxu0 0.0
    %1223 = vmatpush1.msra.mxu0 0.0
    %1224 = vmatprep.subr.mxu0 0.0
    %1225 = vmatpush1.msra.mxu0 0.0
    %1226 = vmatprep.subr.mxu0 0.0
    %1227 = vmatpush1.msra.mxu0 0.0
    %1228 = vmatprep.subr.mxu0 0.0
    %1229 = vmatpush1.msra.mxu0 0.0
    %1230 = vmatprep.subr.mxu0 0.0
    %1231 = vmatpush1.msra.mxu0 0.0
    %1232 = vmatprep.subr.mxu0 0.0
    %1233 = vmatpush1.msra.mxu0 0.0
    %1234 = vmatprep.subr.mxu0 0.0
    %1235 = vmatpush1.msra.mxu0 0.0
    %1236 = vmatprep.subr.mxu0 0.0
    %1237 = vmatpush1.msra.mxu0 0.0
    %1238 = vmatprep.subr.mxu0 0.0
    %1239 = vmatpush1.msra.mxu0 0.0
    %1240 = vmatprep.subr.mxu0 0.0
    %1241 = vmatpush1.msra.mxu0 0.0
    %1242 = vmatprep.subr.mxu0 0.0
    %1243 = vmatpush1.msra.mxu0 0.0
    %1244 = vmatprep.subr.mxu0 0.0
    %1245 = vmatpush1.msra.mxu0 0.0
    %1246 = vmatprep.subr.mxu0 0.0
    %1247 = vmatpush1.msra.mxu0 0.0
    %1248 = vmatprep.subr.mxu0 0.0
    %1249 = vmatpush1.msra.mxu0 0.0
    %1250 = vmatprep.subr.mxu0 0.0
    %1251 = vmatpush1.msra.mxu0 0.0
    %1252 = vmatprep.subr.mxu0 0.0
    %1253 = vmatpush1.msra.mxu0 0.0
    %1254 = vmatprep.subr.mxu0 0.0
    %1255 = vmatpush1.msra.mxu0 0.0
    %1256 = vmatprep.subr.mxu0 0.0
    %1257 = vmatpush1.msra.mxu0 0.0
    %1258 = vmatprep.subr.mxu0 0.0
    %1259 = vmatpush1.msra.mxu0 0.0
    %1260 = vmatprep.subr.mxu0 0.0
    %1261 = vmatpush1.msra.mxu0 0.0
    %1262 = vmatprep.subr.mxu0 0.0
    %1263 = vmatpush1.msra.mxu0 0.0
    %1264 = vmatprep.subr.mxu0 0.0
    %1265 = vmatpush1.msra.mxu0 0.0
    %1266 = vmatprep.mubr.f32.mxu0 0.0
    %1267 = vmatmul.mubr.f32.gmra.mrb[0].mxu0 %v753
    %v1268 = vpop.f32.mrb[0].mxu0
    %v1269 = vadd.f32 0.0, %v1268
    %v1270 = vpop.f32.mrb[0].mxu0
    %1271 = vdwg.mxu0
    %1272 = vmatprep.subr.mxu0 0.0
    %1273 = vmatpush1.msra.mxu0 %v542
    %1274 = vmatprep.subr.mxu0 0.0
    %1275 = vmatpush1.msra.mxu0 %v547
    %1276 = vmatprep.subr.mxu0 0.0
    %1277 = vmatpush1.msra.mxu0 0.0
    %1278 = vmatprep.subr.mxu0 0.0
    %1279 = vmatpush1.msra.mxu0 0.0
    %1280 = vmatprep.subr.mxu0 0.0
    %1281 = vmatpush1.msra.mxu0 0.0
    %1282 = vmatprep.subr.mxu0 0.0
    %1283 = vmatpush1.msra.mxu0 0.0
    %1284 = vmatprep.subr.mxu0 0.0
    %1285 = vmatpush1.msra.mxu0 0.0
    %1286 = vmatprep.subr.mxu0 0.0
    %1287 = vmatpush1.msra.mxu0 0.0
    %1288 = vmatprep.subr.mxu0 0.0
    %1289 = vmatpush1.msra.mxu0 0.0
    %1290 = vmatprep.subr.mxu0 0.0
    %1291 = vmatpush1.msra.mxu0 0.0
    %1292 = vmatprep.subr.mxu0 0.0
    %1293 = vmatpush1.msra.mxu0 0.0
    %1294 = vmatprep.subr.mxu0 0.0
    %1295 = vmatpush1.msra.mxu0 0.0
    %1296 = vmatprep.subr.mxu0 0.0
    %1297 = vmatpush1.msra.mxu0 0.0
    %1298 = vmatprep.subr.mxu0 0.0
    %1299 = vmatpush1.msra.mxu0 0.0
    %1300 = vmatprep.subr.mxu0 0.0
    %1301 = vmatpush1.msra.mxu0 0.0
    %1302 = vmatprep.subr.mxu0 0.0
    %1303 = vmatpush1.msra.mxu0 0.0
    %1304 = vmatprep.subr.mxu0 0.0
    %1305 = vmatpush1.msra.mxu0 0.0
    %1306 = vmatprep.subr.mxu0 0.0
    %1307 = vmatpush1.msra.mxu0 0.0
    %1308 = vmatprep.subr.mxu0 0.0
    %1309 = vmatpush1.msra.mxu0 0.0
    %1310 = vmatprep.subr.mxu0 0.0
    %1311 = vmatpush1.msra.mxu0 0.0
    %1312 = vmatprep.subr.mxu0 0.0
    %1313 = vmatpush1.msra.mxu0 0.0
    %1314 = vmatprep.subr.mxu0 0.0
    %1315 = vmatpush1.msra.mxu0 0.0
    %1316 = vmatprep.subr.mxu0 0.0
    %1317 = vmatpush1.msra.mxu0 0.0
    %1318 = vmatprep.subr.mxu0 0.0
    %1319 = vmatpush1.msra.mxu0 0.0
    %1320 = vmatprep.subr.mxu0 0.0
    %1321 = vmatpush1.msra.mxu0 0.0
    %1322 = vmatprep.subr.mxu0 0.0
    %1323 = vmatpush1.msra.mxu0 0.0
    %1324 = vmatprep.subr.mxu0 0.0
    %1325 = vmatpush1.msra.mxu0 0.0
    %1326 = vmatprep.subr.mxu0 0.0
    %1327 = vmatpush1.msra.mxu0 0.0
    %1328 = vmatprep.subr.mxu0 0.0
    %1329 = vmatpush1.msra.mxu0 0.0
    %1330 = vmatprep.subr.mxu0 0.0
    %1331 = vmatpush1.msra.mxu0 0.0
    %1332 = vmatprep.subr.mxu0 0.0
    %1333 = vmatpush1.msra.mxu0 0.0
    %1334 = vmatprep.subr.mxu0 0.0
    %1335 = vmatpush1.msra.mxu0 0.0
    %1336 = vmatprep.mubr.f32.mxu0 0.0
    %1337 = vmatmul.mubr.f32.gmra.mrb[0].mxu0 %v753
    %v1338 = vpop.f32.mrb[0].mxu0
    %v1339 = vadd.f32 0.0, %v1338
    %v1340 = vpop.f32.mrb[0].mxu0
    %1341 = vdwg.mxu0
    %1342 = vmatprep.subr.mxu0 0.0
    %1343 = vmatpush1.msra.mxu0 %v643
    %1344 = vmatprep.subr.mxu0 0.0
    %1345 = vmatpush1.msra.mxu0 %v648
    %1346 = vmatprep.subr.mxu0 0.0
    %1347 = vmatpush1.msra.mxu0 0.0
    %1348 = vmatprep.subr.mxu0 0.0
    %1349 = vmatpush1.msra.mxu0 0.0
    %1350 = vmatprep.subr.mxu0 0.0
    %1351 = vmatpush1.msra.mxu0 0.0
    %1352 = vmatprep.subr.mxu0 0.0
    %1353 = vmatpush1.msra.mxu0 0.0
    %1354 = vmatprep.subr.mxu0 0.0
    %1355 = vmatpush1.msra.mxu0 0.0
    %1356 = vmatprep.subr.mxu0 0.0
    %1357 = vmatpush1.msra.mxu0 0.0
    %1358 = vmatprep.subr.mxu0 0.0
    %1359 = vmatpush1.msra.mxu0 0.0
    %1360 = vmatprep.subr.mxu0 0.0
    %1361 = vmatpush1.msra.mxu0 0.0
    %1362 = vmatprep.subr.mxu0 0.0
    %1363 = vmatpush1.msra.mxu0 0.0
    %1364 = vmatprep.subr.mxu0 0.0
    %1365 = vmatpush1.msra.mxu0 0.0
    %1366 = vmatprep.subr.mxu0 0.0
    %1367 = vmatpush1.msra.mxu0 0.0
    %1368 = vmatprep.subr.mxu0 0.0
    %1369 = vmatpush1.msra.mxu0 0.0
    %1370 = vmatprep.subr.mxu0 0.0
    %1371 = vmatpush1.msra.mxu0 0.0
    %1372 = vmatprep.subr.mxu0 0.0
    %1373 = vmatpush1.msra.mxu0 0.0
    %1374 = vmatprep.subr.mxu0 0.0
    %1375 = vmatpush1.msra.mxu0 0.0
    %1376 = vmatprep.subr.mxu0 0.0
    %1377 = vmatpush1.msra.mxu0 0.0
    %1378 = vmatprep.subr.mxu0 0.0
    %1379 = vmatpush1.msra.mxu0 0.0
    %1380 = vmatprep.subr.mxu0 0.0
    %1381 = vmatpush1.msra.mxu0 0.0
    %1382 = vmatprep.subr.mxu0 0.0
    %1383 = vmatpush1.msra.mxu0 0.0
    %1384 = vmatprep.subr.mxu0 0.0
    %1385 = vmatpush1.msra.mxu0 0.0
    %1386 = vmatprep.subr.mxu0 0.0
    %1387 = vmatpush1.msra.mxu0 0.0
    %1388 = vmatprep.subr.mxu0 0.0
    %1389 = vmatpush1.msra.mxu0 0.0
    %1390 = vmatprep.subr.mxu0 0.0
    %1391 = vmatpush1.msra.mxu0 0.0
    %1392 = vmatprep.subr.mxu0 0.0
    %1393 = vmatpush1.msra.mxu0 0.0
    %1394 = vmatprep.subr.mxu0 0.0
    %1395 = vmatpush1.msra.mxu0 0.0
    %1396 = vmatprep.subr.mxu0 0.0
    %1397 = vmatpush1.msra.mxu0 0.0
    %1398 = vmatprep.subr.mxu0 0.0
    %1399 = vmatpush1.msra.mxu0 0.0
    %1400 = vmatprep.subr.mxu0 0.0
    %1401 = vmatpush1.msra.mxu0 0.0
    %1402 = vmatprep.subr.mxu0 0.0
    %1403 = vmatpush1.msra.mxu0 0.0
    %1404 = vmatprep.subr.mxu0 0.0
    %1405 = vmatpush1.msra.mxu0 0.0
    %1406 = vmatprep.mubr.f32.mxu0 0.0
    %1407 = vmatmul.mubr.f32.gmra.mrb[0].mxu0 %v753
    %v1408 = vpop.f32.mrb[0].mxu0
    %v1409 = vadd.f32 0.0, %v1408
    %v1410 = vpop.f32.mrb[0].mxu0
    %1411 = vdwg.mxu0
    %1412 = vmatprep.subr.mxu0 0.0
    %1413 = vmatpush1.msra.mxu0 %v744
    %1414 = vmatprep.subr.mxu0 0.0
    %1415 = vmatpush1.msra.mxu0 %v749
    %1416 = vmatprep.subr.mxu0 0.0
    %1417 = vmatpush1.msra.mxu0 0.0
    %1418 = vmatprep.subr.mxu0 0.0
    %1419 = vmatpush1.msra.mxu0 0.0
    %1420 = vmatprep.subr.mxu0 0.0
    %1421 = vmatpush1.msra.mxu0 0.0
    %1422 = vmatprep.subr.mxu0 0.0
    %1423 = vmatpush1.msra.mxu0 0.0
    %1424 = vmatprep.subr.mxu0 0.0
    %1425 = vmatpush1.msra.mxu0 0.0
    %1426 = vmatprep.subr.mxu0 0.0
    %1427 = vmatpush1.msra.mxu0 0.0
    %1428 = vmatprep.subr.mxu0 0.0
    %1429 = vmatpush1.msra.mxu0 0.0
    %1430 = vmatprep.subr.mxu0 0.0
    %1431 = vmatpush1.msra.mxu0 0.0
    %1432 = vmatprep.subr.mxu0 0.0
    %1433 = vmatpush1.msra.mxu0 0.0
    %1434 = vmatprep.subr.mxu0 0.0
    %1435 = vmatpush1.msra.mxu0 0.0
    %1436 = vmatprep.subr.mxu0 0.0
    %1437 = vmatpush1.msra.mxu0 0.0
    %1438 = vmatprep.subr.mxu0 0.0
    %1439 = vmatpush1.msra.mxu0 0.0
    %1440 = vmatprep.subr.mxu0 0.0
    %1441 = vmatpush1.msra.mxu0 0.0
    %1442 = vmatprep.subr.mxu0 0.0
    %1443 = vmatpush1.msra.mxu0 0.0
    %1444 = vmatprep.subr.mxu0 0.0
    %1445 = vmatpush1.msra.mxu0 0.0
    %1446 = vmatprep.subr.mxu0 0.0
    %1447 = vmatpush1.msra.mxu0 0.0
    %1448 = vmatprep.subr.mxu0 0.0
    %1449 = vmatpush1.msra.mxu0 0.0
    %1450 = vmatprep.subr.mxu0 0.0
    %1451 = vmatpush1.msra.mxu0 0.0
    %1452 = vmatprep.subr.mxu0 0.0
    %1453 = vmatpush1.msra.mxu0 0.0
    %1454 = vmatprep.subr.mxu0 0.0
    %1455 = vmatpush1.msra.mxu0 0.0
    %1456 = vmatprep.subr.mxu0 0.0
    %1457 = vmatpush1.msra.mxu0 0.0
    %1458 = vmatprep.subr.mxu0 0.0
    %1459 = vmatpush1.msra.mxu0 0.0
    %1460 = vmatprep.subr.mxu0 0.0
    %1461 = vmatpush1.msra.mxu0 0.0
    %1462 = vmatprep.subr.mxu0 0.0
    %1463 = vmatpush1.msra.mxu0 0.0
    %1464 = vmatprep.subr.mxu0 0.0
    %1465 = vmatpush1.msra.mxu0 0.0
    %1466 = vmatprep.subr.mxu0 0.0
    %1467 = vmatpush1.msra.mxu0 0.0
    %1468 = vmatprep.subr.mxu0 0.0
    %1469 = vmatpush1.msra.mxu0 0.0
    %1470 = vmatprep.subr.mxu0 0.0
    %1471 = vmatpush1.msra.mxu0 0.0
    %1472 = vmatprep.subr.mxu0 0.0
    %1473 = vmatpush1.msra.mxu0 0.0
    %1474 = vmatprep.subr.mxu0 0.0
    %1475 = vmatpush1.msra.mxu0 0.0
    %1476 = vmatprep.mubr.f32.mxu0 0.0
    %1477 = vmatmul.mubr.f32.gmra.mrb[0].mxu0 %v753
    %v1478 = vpop.f32.mrb[0].mxu0
    %v1479 = vadd.f32 0.0, %v1478
    %v1480 = vpop.f32.mrb[0].mxu0
    %1481 = vdwg.mxu0
    %v1482 = vmul.f32 %v1199, %v1199
    %v1483 = vsub.f32 %v1339, %v1482
    %v1484 = vmul.f32 %v1269, %v1269
    %v1485 = vsub.f32 %v1409, %v1484
    %v1486 = vmul.f32 %v1199, %v1269
    %v1487 = vsub.f32 %v1479, %v1486
    %v1488 = vadd.f32 %v1483, %v1485
    %v1489 = vadd.f32 %v1488, 0.0009
    %v1490 = vrcp.pop %v1489
    %v1491 = vmul.f32 %v1489, %v1490
    %v1492 = vsub.f32 2.0, %v1491
    %v1493 = vmul.f32 %v1490, %v1492
    %v1494 = vmul.f32 %v1487, 2.0
    %v1495 = vadd.f32 %v1494, 0.0009
    %v1496 = vmul.f32 %v1495, %v1493
    %v1497 = vsel %vm1120, %v1496, 0.0
    %1498 = vadd.xlane.f32.xlu0 %v1497
    %v1499 = vpop.xlane.xlu0 %1498
    %v1500 = vrot.slane %v1499, 4
    %v1501 = vadd.f32 %v1499, %v1500
    %v1502 = vrot.slane %v1501, 2
    %v1503 = vadd.f32 %v1501, %v1502
    %v1504 = vrot.slane %v1503, 1
    %v1505 = vadd.f32 %v1503, %v1504
    %s1506 = vtos %v1505
    %s1507 = sadd.f32 %s1131, %s1506
    %s1508 = smul.f32 %s1507, 0.013888889
    %s1509 = ssub.f32 1.0, %s1508
    %s1510 = ssub.f32 %s66, %s67
    %s1511 = sand.u32 2147483647, %s1510
    %s1512 = sadd.f32 %s1509, %s1511
    %s1513 = scalar_lea.smem [#allocation9], 0
    %1514 = sst [smem:[%s1513]] %s1512
    %s1515 = scalar_lea.smem [#allocation9], 1
    %1516 = sst [smem:[%s1515]] %s1509
    %s1517 = scalar_lea.smem [#allocation9], 2
    %1518 = sst [smem:[%s1517]] %s1511
    // Predicated region
    $region38: #{tpu_custom_call.1} parent=1 // pred_check
      _
    $region39: #{tpu_custom_call.1} parent=1 // pred_check_branch
      %1520 = sbr.rel (0) target = $region41
    $region40: #{tpu_custom_call.1} parent=1 // pred_region
      %s1522 = ssub.s32 16, 16
      %1523 = vsyncadd [#allocation4], %s1522
      %1526 = dma.smem_to_hbm [#allocation9], 16, %s6, [#allocation4]
    $region41: #{tpu_custom_call.1} parent=1 // pred_fallthru
      _
    // Predicated region
    $region42: #{tpu_custom_call.1} parent=1 // pred_check
      _
    $region43: #{tpu_custom_call.1} parent=1 // pred_check_branch
      %1528 = sbr.rel (0) target = $region45
    $region44: #{tpu_custom_call.1} parent=1 // pred_region
      %1529 = dma.done [#allocation4], 16
    $region45: #{tpu_custom_call.1} parent=1 // pred_fallthru
      _
    %1530 = sfence
    %1531 = vsyncpa [#allocation3], 1
    %1532 = vsyncpa [#allocation8], 1
    %1533 = vsyncpa [#allocation4], 1
    %1534 = vsyncpa [#allocation5], 1

</llo_original>
